<compile_context>
chip_gen: v7x
topology: tpu7x:2x2x1
jax: 0.10.0
libtpu: 0.0.40
codegen_flags: <defaults>
</compile_context>

<pallas_src>
import math

import jax
import jax.numpy as jnp
import numpy as np
from jax.experimental import pallas as pl
from jax.experimental.pallas import tpu as pltpu

# ----------------------- small model config -----------------------
B, H, W = 2, 2, 4              # batch, spatial
S = H * W                      # sequence length per stream (q/k/v) = 8
INPUT_DIM = 16
D_MODEL = 32
NHEAD = 4
HEAD_DIM = D_MODEL // NHEAD    # 8
DIM_FF = 64
NUM_LAYERS = 2
EPS = 1e-5                     # nn.LayerNorm default eps

BS = B * S                     # rows per stream across the whole batch = 16
GCOLS = NHEAD * B * S          # 64 score columns, ordered (head, batch, key)

# x packs [image rows ; dct^T rows]; the concat needs BS == INPUT_DIM (true here).
assert BS == INPUT_DIM

# ----------------- constant-slab layout (static, shapes only) -----------------
SLAB_W = 128                   # lane-dense: multiple of 128 -> unmasked entry DMA

_CONST_SPECS = {
    # name    (rows, cols)
    "W_EMB": (INPUT_DIM, D_MODEL),   # w_emb                         (residual q stream)
    "QRC":   (BS, D_MODEL),          # b_emb + pe_q                  (residual q stream)
    "WEQ":   (INPUT_DIM, D_MODEL),   # w_emb @ wq
    "QC":    (BS, D_MODEL),          # (b_emb + pe_q) @ wq + bq
    "WKET":  (D_MODEL, INPUT_DIM),   # (w_emb @ wk)^T / sqrt(head_dim)
    "REP":   (BS, GCOLS),            # 0/1: replicate (batch,key) columns over heads
    "HM":    (D_MODEL, GCOLS),       # 0/1: head-block mask on K^T rows
    "KCM":   (D_MODEL, GCOLS),       # masked+scaled K bias/PE constant
    "NEG":   (BS, GCOLS),            # -1e30 on cross-batch score columns
    "SEG":   (GCOLS, GCOLS),         # 0/1: per-(head,batch) segment-sum matrix
    "INV":   (BS, GCOLS),            # 1 on cross-batch cols (keeps softmax denom != 0)
    "WEV":   (INPUT_DIM, D_MODEL),   # w_emb @ wv
    "VC":    (BS, D_MODEL),          # (b_emb + pe_v) @ wv + bv
    "REPV":  (GCOLS, BS),            # 0/1: replicate V rows over heads
    "HMV":   (GCOLS, D_MODEL),       # 0/1: head-block mask on V
    "WO":    (D_MODEL, D_MODEL),
    "W1":    (D_MODEL, DIM_FF),
    "W2":    (DIM_FF, D_MODEL),
    "WOUT":  (D_MODEL, INPUT_DIM),
    "B1":    (1, DIM_FF),
    "BOUT":  (1, INPUT_DIM),
    "VEC32": (8, D_MODEL),           # rows: bo, b2, g1, be1, g2, be2, gn, bn
}

_OFFSETS = {}
_r = 0
for _name, (_h, _w) in _CONST_SPECS.items():
    assert _w <= SLAB_W
    _OFFSETS[_name] = _r
    _r += ((_h + 7) // 8) * 8        # keep every block row-aligned to 8 (sublane tile)
SLAB_H = ((_r + 7) // 8) * 8         # 616 rows -> ~315 KB, tiny vs VMEM


def _cblk(c_ref, name):
    h, w = _CONST_SPECS[name]
    r = _OFFSETS[name]
    return c_ref[r:r + h, 0:w]       # every load starts at lane 0 (no lane extraction)


def _layernorm(x, g, b):
    mu = jnp.mean(x, axis=-1, keepdims=True)
    var = jnp.mean((x - mu) ** 2, axis=-1, keepdims=True)
    return (x - mu) * jax.lax.rsqrt(var + EPS) * g + b


# ----------------------- the Pallas kernel -----------------------
def transformer_dual_kernel(x_ref, c_ref, out_ref):
    dot = lambda a, b: jnp.dot(a, b, preferred_element_type=jnp.float32)
    c = lambda name: _cblk(c_ref, name)

    img = x_ref[0:BS, :]                    # [16,16] image rows, ordered (b, q)
    dct_t = x_ref[BS:BS + INPUT_DIM, :]     # [16,16] dct rows, already transposed

    # q stream (residual) and Q projection, embedding matmul folded into constants.
    q_in = dot(img, c("W_EMB")) + c("QRC")                    # [16,32]
    q = dot(img, c("WEQ")) + c("QC")                          # [16,32]

    # K side: head-block-diagonal K^T operand built with constant 0/1 matmuls on the
    # (idle) MXU instead of lane slices / transposes (XLU is the binding slot).
    m_small = dot(c("WKET"), dct_t)                           # [32,16]
    m_bd = dot(m_small, c("REP")) * c("HM") + c("KCM")        # [32,64]

    # V side: V rows replicated per head via a 0/1 matmul, then head-masked.
    v = dot(img, c("WEV")) + c("VC")                          # [16,32]
    v_bd = dot(c("REPV"), v) * c("HMV")                       # [64,32]

    # Scores over all (head, batch, key) columns; cross-batch columns -> -1e30.
    scores = dot(q, m_bd) + c("NEG")                          # [16,64]
    m_row = jnp.max(scores, axis=-1, keepdims=True)
    e = jnp.exp(scores - m_row)                               # cross-batch -> exactly 0
    denom = dot(e, c("SEG")) + c("INV")                       # segmented sums, broadcast
    attn = e * pl.reciprocal(denom, approx=True)
    attn_out = dot(attn, v_bd)                                # [16,32] head-concatenated

    vec = c("VEC32")
    bo, b2 = vec[0:1, :], vec[1:2, :]
    g1, be1 = vec[2:3, :], vec[3:4, :]
    g2, be2 = vec[4:5, :], vec[5:6, :]
    gn, bn = vec[6:7, :], vec[7:8, :]

    # encoder layer: residual + norm, FFN, residual + norm, final encoder norm
    src2 = dot(attn_out, c("WO")) + bo
    src = _layernorm(q_in + src2, g1, be1)
    ff = jnp.maximum(dot(src, c("W1")) + c("B1"), 0.0)
    src2 = dot(ff, c("W2")) + b2
    src = _layernorm(src + src2, g2, be2)
    src = _layernorm(src, gn, bn)

    # output projection back to input_dim; 2D store, reshape happens in the wrapper
    out_ref[...] = (dot(src, c("WOUT")) + c("BOUT")).astype(out_ref.dtype)


# ----------------------- one-time constant packing (hoisted) -----------------------
def positional_encoding(length, d_model):
    pos = np.arange(length, dtype=np.float32)[:, None]
    div = np.exp(np.arange(0, d_model, 2, dtype=np.float32)
                 * (-math.log(10000.0) / d_model))
    pe = np.zeros((length, d_model), np.float32)
    pe[:, 0::2] = np.sin(pos * div)
    pe[:, 1::2] = np.cos(pos * div)
    return pe


def precompute_constants(params):
    """Fold every weight/bias/PE/mask into one lane-dense [SLAB_H,128] f32 slab.
    Called ONCE; nothing here runs on the per-forward path."""
    f = lambda a: np.asarray(a, np.float32)
    pe = positional_encoding(3 * S, D_MODEL)
    pe_q = np.tile(pe[0:S], (B, 1))            # [16,32], rows ordered (b, q)
    pe_k = np.tile(pe[S:2 * S], (B, 1))
    pe_v = np.tile(pe[2 * S:3 * S], (B, 1))

    L = params["layers"][-1]   # only the last layer's output survives the PyTorch loop
    w_emb, b_emb = f(params["emb"][0]), f(params["emb"][1])
    wq, bq = f(L["wq"][0]), f(L["wq"][1])
    wk, bk = f(L["wk"][0]), f(L["wk"][1])
    wv, bv = f(L["wv"][0]), f(L["wv"][1])
    wo, bo = f(L["wo"][0]), f(L["wo"][1])
    w1, b1 = f(L["w1"][0]), f(L["w1"][1])
    w2, b2 = f(L["w2"][0]), f(L["w2"][1])
    wout, bout = f(params["out"][0]), f(params["out"][1])
    scale = 1.0 / math.sqrt(HEAD_DIM)

    # score-column index maps; column order = (head, batch, key)
    col_h = np.repeat(np.arange(NHEAD), B * S)          # [64]
    col_bk = np.tile(np.arange(B * S), NHEAD)           # [64]
    col_b = col_bk // S
    row_b = np.repeat(np.arange(B), S)                  # [16]
    c_head = np.arange(D_MODEL) // HEAD_DIM             # [32]

    hm = (c_head[:, None] == col_h[None, :]).astype(np.float32)      # [32,64]
    kc = (b_emb + pe_k) @ wk + bk                                    # [16,32], rows (b,k)

    blocks = {
        "W_EMB": w_emb,
        "QRC": (b_emb + pe_q),
        "WEQ": w_emb @ wq,
        "QC": (b_emb + pe_q) @ wq + bq,
        "WKET": (w_emb @ wk).T * scale,
        "REP": (np.arange(B * S)[:, None] == col_bk[None, :]).astype(np.float32),
        "HM": hm,
        "KCM": kc.T[:, col_bk] * hm * scale,
        "NEG": np.where(row_b[:, None] != col_b[None, :], -1e30, 0.0).astype(np.float32),
        "SEG": ((col_h[:, None] == col_h[None, :])
                & (col_b[:, None] == col_b[None, :])).astype(np.float32),
        "INV": (row_b[:, None] != col_b[None, :]).astype(np.float32),
        "WEV": w_emb @ wv,
        "VC": (b_emb + pe_v) @ wv + bv,
        "REPV": (col_bk[:, None] == np.arange(B * S)[None, :]).astype(np.float32),
        "HMV": (col_h[:, None] == c_head[None, :]).astype(np.float32),
        "WO": wo, "W1": w1, "W2": w2, "WOUT": wout,
        "B1": b1, "BOUT": bout,
        "VEC32": np.concatenate([bo, b2, f(L["g1"]), f(L["be1"]), f(L["g2"]),
                                 f(L["be2"]), f(params["gn"]), f(params["bn"])], axis=0),
    }

    slab = np.zeros((SLAB_H, SLAB_W), np.float32)
    for name, (h, w) in _CONST_SPECS.items():
        arr = np.asarray(blocks[name], np.float32)
        assert arr.shape == (h, w), (name, arr.shape, (h, w))
        r = _OFFSETS[name]
        slab[r:r + h, 0:w] = arr
    return jnp.asarray(slab)


# ----------------------- per-call wrapper (jitted, minimal) -----------------------
_COST = pl.CostEstimate(flops=700_000, transcendentals=2_200, bytes_accessed=330_000)


@jax.jit
def transformer_dual_forward(image, dct_image, const_slab):
    # Per-call work: one reshape + transpose + concat building x; everything else
    # lives in the precomputed constant slab.
    img = image.reshape(BS, INPUT_DIM).astype(jnp.float32)
    dct_t = dct_image.reshape(BS, INPUT_DIM).astype(jnp.float32).T   # [16,16]
    x = jnp.concatenate([img, dct_t], axis=0)                        # [32,16]

    vmem = pl.BlockSpec(memory_space=pltpu.MemorySpace.VMEM)
    # Single ungridded invocation: the whole problem (~320 KB) is VMEM-resident.
    # If many independent (image, dct) problems were batched, add a leading
    # "parallel" grid axis to shard across v7x's two TensorCores.
    out2d = pl.pallas_call(
        transformer_dual_kernel,
        in_specs=[vmem, vmem],
        out_specs=vmem,
        out_shape=jax.ShapeDtypeStruct((BS, INPUT_DIM), jnp.float32),
        cost_estimate=_COST,
    )(x, const_slab)
    return out2d.reshape(B, S, INPUT_DIM)


# ----------------------- synthetic parameters -----------------------
def make_params(key):
    """Deterministic synthetic parameters (weights stored as [in, out])."""
    def lin(k, fan_in, fan_out):
        k1, k2 = jax.random.split(k)
        bound = 1.0 / math.sqrt(fan_in)
        w = jax.random.uniform(k1, (fan_in, fan_out), jnp.float32, -bound, bound)
        b = jax.random.uniform(k2, (1, fan_out), jnp.float32, -bound, bound)
        return w, b

    keys = jax.random.split(key, 2 + NUM_LAYERS)
    params = {
        "emb": lin(keys[0], INPUT_DIM, D_MODEL),
        "out": lin(keys[1], D_MODEL, INPUT_DIM),
        "gn": jnp.ones((1, D_MODEL), jnp.float32),
        "bn": jnp.zeros((1, D_MODEL), jnp.float32),
        "layers": [],
    }
    for i in range(NUM_LAYERS):
        kk = jax.random.split(keys[2 + i], 6)
        params["layers"].append(dict(
            wq=lin(kk[0], D_MODEL, D_MODEL), wk=lin(kk[1], D_MODEL, D_MODEL),
            wv=lin(kk[2], D_MODEL, D_MODEL), wo=lin(kk[3], D_MODEL, D_MODEL),
            w1=lin(kk[4], D_MODEL, DIM_FF), w2=lin(kk[5], DIM_FF, D_MODEL),
            g1=jnp.ones((1, D_MODEL), jnp.float32),
            be1=jnp.zeros((1, D_MODEL), jnp.float32),
            g2=jnp.ones((1, D_MODEL), jnp.float32),
            be2=jnp.zeros((1, D_MODEL), jnp.float32),
        ))
    return params


# ----------------------- pure-JAX reference -----------------------
def reference_forward(image, dct_image, params):
    img = image.reshape(B, S, INPUT_DIM).astype(jnp.float32)
    dct = dct_image.reshape(B, S, INPUT_DIM).astype(jnp.float32)
    pe = jnp.asarray(positional_encoding(3 * S, D_MODEL))

    w_emb, b_emb = params["emb"]
    img_e = img @ w_emb + b_emb
    dct_e = dct @ w_emb + b_emb
    q = img_e + pe[None, 0:S]
    k = dct_e + pe[None, S:2 * S]
    v = img_e + pe[None, 2 * S:3 * S]

    L = params["layers"][-1]
    wq, bq = L["wq"]; wk, bk = L["wk"]; wv, bv = L["wv"]; wo, bo = L["wo"]
    qp = (q @ wq + bq).reshape(B, S, NHEAD, HEAD_DIM).transpose(0, 2, 1, 3)
    kp = (k @ wk + bk).reshape(B, S, NHEAD, HEAD_DIM).transpose(0, 2, 1, 3)
    vp = (v @ wv + bv).reshape(B, S, NHEAD, HEAD_DIM).transpose(0, 2, 1, 3)
    scores = qp @ kp.transpose(0, 1, 3, 2) / math.sqrt(HEAD_DIM)
    attn = jax.nn.softmax(scores, axis=-1)
    o = (attn @ vp).transpose(0, 2, 1, 3).reshape(B, S, D_MODEL)
    src2 = o @ wo + bo

    src = _layernorm(q + src2, L["g1"], L["be1"])
    w1, b1 = L["w1"]; w2, b2 = L["w2"]
    src2 = jax.nn.relu(src @ w1 + b1) @ w2 + b2
    src = _layernorm(src + src2, L["g2"], L["be2"])
    src = _layernorm(src, params["gn"], params["bn"])
    wout, bout = params["out"]
    return src @ wout + bout


# ----------------------- main -----------------------
if __name__ == "__main__":
    key = jax.random.PRNGKey(0)
    k_img, k_dct, k_par = jax.random.split(key, 3)
    image = jax.random.normal(k_img, (B, H, W, INPUT_DIM), jnp.float32)
    dct_image = jax.random.normal(k_dct, (B, H, W, INPUT_DIM), jnp.float32)
    params = make_params(k_par)

    const_slab = precompute_constants(params)   # one-time, hoisted off the call path

    out = jax.block_until_ready(transformer_dual_forward(image, dct_image, const_slab))
    ref = jax.block_until_ready(reference_forward(image, dct_image, params))

    assert out.shape == (B, S, INPUT_DIM)
    # tolerance 2e-3: kernel softmax uses pl.reciprocal(approx=True); otherwise f32.
    max_diff = float(np.max(np.abs(np.asarray(out) - np.asarray(ref))))
    assert np.allclose(np.asarray(out), np.asarray(ref), atol=2e-3, rtol=2e-3), (
        f"Pallas kernel output mismatch vs JAX reference (max abs diff {max_diff})")

    print("KERNEL_OK")
</pallas_src>

<mosaic_0001>
module attributes {stable_mosaic.version = 11 : i64} {
  func.func @transformer_dual_kernel(%arg0: memref<32x16xf32, #tpu.memory_space<vmem>>, %arg1: memref<616x128xf32, #tpu.memory_space<vmem>>, %arg2: memref<16x16xf32, #tpu.memory_space<vmem>>) attributes {dimension_semantics = [], scalar_prefetch = 0 : i64, scratch_operands = 0 : i64, tpu.core_type = #tpu.core_type<tc>} {
    %c0 = arith.constant 0 : index
    %c0_0 = arith.constant 0 : index
    %0 = vector.load %arg0[%c0, %c0_0] : memref<32x16xf32, #tpu.memory_space<vmem>>, vector<16x16xf32>
    %c16 = arith.constant 16 : index
    %c0_1 = arith.constant 0 : index
    %1 = vector.load %arg0[%c16, %c0_1] : memref<32x16xf32, #tpu.memory_space<vmem>>, vector<16x16xf32>
    %c0_2 = arith.constant 0 : index
    %c0_3 = arith.constant 0 : index
    %2 = vector.load %arg1[%c0_2, %c0_3] : memref<616x128xf32, #tpu.memory_space<vmem>>, vector<16x32xf32>
    %cst = arith.constant dense<0.000000e+00> : vector<16x32xf32>
    %3 = tpu.matmul %0, %2, %cst {dimension_numbers = #tpu.dot_dimension_numbers<[1], [0], [0], [1], [0, 0, 1, 1], [], []>} : vector<16x16xf32>, vector<16x32xf32>, vector<16x32xf32> -> vector<16x32xf32>
    %c16_4 = arith.constant 16 : index
    %c0_5 = arith.constant 0 : index
    %4 = vector.load %arg1[%c16_4, %c0_5] : memref<616x128xf32, #tpu.memory_space<vmem>>, vector<16x32xf32>
    %5 = arith.addf %3, %4 : vector<16x32xf32>
    %c32 = arith.constant 32 : index
    %c0_6 = arith.constant 0 : index
    %6 = vector.load %arg1[%c32, %c0_6] : memref<616x128xf32, #tpu.memory_space<vmem>>, vector<16x32xf32>
    %cst_7 = arith.constant dense<0.000000e+00> : vector<16x32xf32>
    %7 = tpu.matmul %0, %6, %cst_7 {dimension_numbers = #tpu.dot_dimension_numbers<[1], [0], [0], [1], [0, 0, 1, 1], [], []>} : vector<16x16xf32>, vector<16x32xf32>, vector<16x32xf32> -> vector<16x32xf32>
    %c48 = arith.constant 48 : index
    %c0_8 = arith.constant 0 : index
    %8 = vector.load %arg1[%c48, %c0_8] : memref<616x128xf32, #tpu.memory_space<vmem>>, vector<16x32xf32>
    %9 = arith.addf %7, %8 : vector<16x32xf32>
    %c64 = arith.constant 64 : index
    %c0_9 = arith.constant 0 : index
    %10 = vector.load %arg1[%c64, %c0_9] : memref<616x128xf32, #tpu.memory_space<vmem>>, vector<32x16xf32>
    %cst_10 = arith.constant dense<0.000000e+00> : vector<32x16xf32>
    %11 = tpu.matmul %10, %1, %cst_10 {dimension_numbers = #tpu.dot_dimension_numbers<[1], [0], [0], [1], [0, 0, 1, 1], [], []>} : vector<32x16xf32>, vector<16x16xf32>, vector<32x16xf32> -> vector<32x16xf32>
    %c96 = arith.constant 96 : index
    %c0_11 = arith.constant 0 : index
    %12 = vector.load %arg1[%c96, %c0_11] : memref<616x128xf32, #tpu.memory_space<vmem>>, vector<16x64xf32>
    %cst_12 = arith.constant dense<0.000000e+00> : vector<32x64xf32>
    %13 = tpu.matmul %11, %12, %cst_12 {dimension_numbers = #tpu.dot_dimension_numbers<[1], [0], [0], [1], [0, 0, 1, 1], [], []>} : vector<32x16xf32>, vector<16x64xf32>, vector<32x64xf32> -> vector<32x64xf32>
    %c112 = arith.constant 112 : index
    %c0_13 = arith.constant 0 : index
    %14 = vector.load %arg1[%c112, %c0_13] : memref<616x128xf32, #tpu.memory_space<vmem>>, vector<32x64xf32>
    %15 = arith.mulf %13, %14 : vector<32x64xf32>
    %c144 = arith.constant 144 : index
    %c0_14 = arith.constant 0 : index
    %16 = vector.load %arg1[%c144, %c0_14] : memref<616x128xf32, #tpu.memory_space<vmem>>, vector<32x64xf32>
    %17 = arith.addf %15, %16 : vector<32x64xf32>
    %c272 = arith.constant 272 : index
    %c0_15 = arith.constant 0 : index
    %18 = vector.load %arg1[%c272, %c0_15] : memref<616x128xf32, #tpu.memory_space<vmem>>, vector<16x32xf32>
    %cst_16 = arith.constant dense<0.000000e+00> : vector<16x32xf32>
    %19 = tpu.matmul %0, %18, %cst_16 {dimension_numbers = #tpu.dot_dimension_numbers<[1], [0], [0], [1], [0, 0, 1, 1], [], []>} : vector<16x16xf32>, vector<16x32xf32>, vector<16x32xf32> -> vector<16x32xf32>
    %c288 = arith.constant 288 : index
    %c0_17 = arith.constant 0 : index
    %20 = vector.load %arg1[%c288, %c0_17] : memref<616x128xf32, #tpu.memory_space<vmem>>, vector<16x32xf32>
    %21 = arith.addf %19, %20 : vector<16x32xf32>
    %c304 = arith.constant 304 : index
    %c0_18 = arith.constant 0 : index
    %22 = vector.load %arg1[%c304, %c0_18] : memref<616x128xf32, #tpu.memory_space<vmem>>, vector<64x16xf32>
    %cst_19 = arith.constant dense<0.000000e+00> : vector<64x32xf32>
    %23 = tpu.matmul %22, %21, %cst_19 {dimension_numbers = #tpu.dot_dimension_numbers<[1], [0], [0], [1], [0, 0, 1, 1], [], []>} : vector<64x16xf32>, vector<16x32xf32>, vector<64x32xf32> -> vector<64x32xf32>
    %c368 = arith.constant 368 : index
    %c0_20 = arith.constant 0 : index
    %24 = vector.load %arg1[%c368, %c0_20] : memref<616x128xf32, #tpu.memory_space<vmem>>, vector<64x32xf32>
    %25 = arith.mulf %23, %24 : vector<64x32xf32>
    %cst_21 = arith.constant dense<0.000000e+00> : vector<16x64xf32>
    %26 = tpu.matmul %9, %17, %cst_21 {dimension_numbers = #tpu.dot_dimension_numbers<[1], [0], [0], [1], [0, 0, 1, 1], [], []>} : vector<16x32xf32>, vector<32x64xf32>, vector<16x64xf32> -> vector<16x64xf32>
    %c176 = arith.constant 176 : index
    %c0_22 = arith.constant 0 : index
    %27 = vector.load %arg1[%c176, %c0_22] : memref<616x128xf32, #tpu.memory_space<vmem>>, vector<16x64xf32>
    %28 = arith.addf %26, %27 : vector<16x64xf32>
    %cst_23 = arith.constant dense<0xFF800000> : vector<16xf32>
    %29 = vector.multi_reduction <maximumf>, %28, %cst_23 [1] : vector<16x64xf32> to vector<16xf32>
    %30 = vector.shape_cast %29 : vector<16xf32> to vector<16x1xf32>
    %31 = vector.broadcast %30 : vector<16x1xf32> to vector<16x64xf32>
    %32 = arith.subf %28, %31 : vector<16x64xf32>
    %33 = math.exp %32 : vector<16x64xf32>
    %c192 = arith.constant 192 : index
    %c0_24 = arith.constant 0 : index
    %34 = vector.load %arg1[%c192, %c0_24] : memref<616x128xf32, #tpu.memory_space<vmem>>, vector<64x64xf32>
    %cst_25 = arith.constant dense<0.000000e+00> : vector<16x64xf32>
    %35 = tpu.matmul %33, %34, %cst_25 {dimension_numbers = #tpu.dot_dimension_numbers<[1], [0], [0], [1], [0, 0, 1, 1], [], []>} : vector<16x64xf32>, vector<64x64xf32>, vector<16x64xf32> -> vector<16x64xf32>
    %c256 = arith.constant 256 : index
    %c0_26 = arith.constant 0 : index
    %36 = vector.load %arg1[%c256, %c0_26] : memref<616x128xf32, #tpu.memory_space<vmem>>, vector<16x64xf32>
    %37 = arith.addf %35, %36 : vector<16x64xf32>
    %38 = tpu.reciprocal %37 {approx = true} : vector<16x64xf32> -> vector<16x64xf32>
    %39 = arith.mulf %33, %38 : vector<16x64xf32>
    %cst_27 = arith.constant dense<0.000000e+00> : vector<16x32xf32>
    %40 = tpu.matmul %39, %25, %cst_27 {dimension_numbers = #tpu.dot_dimension_numbers<[1], [0], [0], [1], [0, 0, 1, 1], [], []>} : vector<16x64xf32>, vector<64x32xf32>, vector<16x32xf32> -> vector<16x32xf32>
    %c608 = arith.constant 608 : index
    %c0_28 = arith.constant 0 : index
    %41 = vector.load %arg1[%c608, %c0_28] : memref<616x128xf32, #tpu.memory_space<vmem>>, vector<8x32xf32>
    %42 = vector.extract_strided_slice %41 {offsets = [0, 0], sizes = [1, 32], strides = [1, 1]} : vector<8x32xf32> to vector<1x32xf32>
    %43 = vector.extract_strided_slice %41 {offsets = [1, 0], sizes = [1, 32], strides = [1, 1]} : vector<8x32xf32> to vector<1x32xf32>
    %44 = vector.extract_strided_slice %41 {offsets = [2, 0], sizes = [1, 32], strides = [1, 1]} : vector<8x32xf32> to vector<1x32xf32>
    %45 = vector.extract_strided_slice %41 {offsets = [3, 0], sizes = [1, 32], strides = [1, 1]} : vector<8x32xf32> to vector<1x32xf32>
    %46 = vector.extract_strided_slice %41 {offsets = [4, 0], sizes = [1, 32], strides = [1, 1]} : vector<8x32xf32> to vector<1x32xf32>
    %47 = vector.extract_strided_slice %41 {offsets = [5, 0], sizes = [1, 32], strides = [1, 1]} : vector<8x32xf32> to vector<1x32xf32>
    %48 = vector.extract_strided_slice %41 {offsets = [6, 0], sizes = [1, 32], strides = [1, 1]} : vector<8x32xf32> to vector<1x32xf32>
    %49 = vector.extract_strided_slice %41 {offsets = [7, 0], sizes = [1, 32], strides = [1, 1]} : vector<8x32xf32> to vector<1x32xf32>
    %c432 = arith.constant 432 : index
    %c0_29 = arith.constant 0 : index
    %50 = vector.load %arg1[%c432, %c0_29] : memref<616x128xf32, #tpu.memory_space<vmem>>, vector<32x32xf32>
    %cst_30 = arith.constant dense<0.000000e+00> : vector<16x32xf32>
    %51 = tpu.matmul %40, %50, %cst_30 {dimension_numbers = #tpu.dot_dimension_numbers<[1], [0], [0], [1], [0, 0, 1, 1], [], []>} : vector<16x32xf32>, vector<32x32xf32>, vector<16x32xf32> -> vector<16x32xf32>
    %52 = vector.broadcast %42 : vector<1x32xf32> to vector<16x32xf32>
    %53 = arith.addf %51, %52 : vector<16x32xf32>
    %54 = arith.addf %5, %53 : vector<16x32xf32>
    %cst_31 = arith.constant dense<0.000000e+00> : vector<16xf32>
    %55 = vector.multi_reduction <add>, %54, %cst_31 [1] : vector<16x32xf32> to vector<16xf32>
    %56 = vector.shape_cast %55 : vector<16xf32> to vector<16x1xf32>
    %cst_32 = arith.constant 3.200000e+01 : f32
    %57 = vector.broadcast %cst_32 : f32 to vector<16x1xf32>
    %58 = arith.divf %56, %57 : vector<16x1xf32>
    %59 = vector.broadcast %58 : vector<16x1xf32> to vector<16x32xf32>
    %60 = arith.subf %54, %59 : vector<16x32xf32>
    %61 = arith.mulf %60, %60 : vector<16x32xf32>
    %cst_33 = arith.constant dense<0.000000e+00> : vector<16xf32>
    %62 = vector.multi_reduction <add>, %61, %cst_33 [1] : vector<16x32xf32> to vector<16xf32>
    %63 = vector.shape_cast %62 : vector<16xf32> to vector<16x1xf32>
    %cst_34 = arith.constant 3.200000e+01 : f32
    %64 = vector.broadcast %cst_34 : f32 to vector<16x1xf32>
    %65 = arith.divf %63, %64 : vector<16x1xf32>
    %66 = vector.broadcast %58 : vector<16x1xf32> to vector<16x32xf32>
    %67 = arith.subf %54, %66 : vector<16x32xf32>
    %cst_35 = arith.constant 9.99999974E-6 : f32
    %68 = vector.broadcast %cst_35 : f32 to vector<16x1xf32>
    %69 = arith.addf %65, %68 : vector<16x1xf32>
    %70 = math.rsqrt %69 : vector<16x1xf32>
    %71 = vector.broadcast %70 : vector<16x1xf32> to vector<16x32xf32>
    %72 = arith.mulf %67, %71 : vector<16x32xf32>
    %73 = vector.broadcast %44 : vector<1x32xf32> to vector<16x32xf32>
    %74 = arith.mulf %72, %73 : vector<16x32xf32>
    %75 = vector.broadcast %45 : vector<1x32xf32> to vector<16x32xf32>
    %76 = arith.addf %74, %75 : vector<16x32xf32>
    %c464 = arith.constant 464 : index
    %c0_36 = arith.constant 0 : index
    %77 = vector.load %arg1[%c464, %c0_36] : memref<616x128xf32, #tpu.memory_space<vmem>>, vector<32x64xf32>
    %cst_37 = arith.constant dense<0.000000e+00> : vector<16x64xf32>
    %78 = tpu.matmul %76, %77, %cst_37 {dimension_numbers = #tpu.dot_dimension_numbers<[1], [0], [0], [1], [0, 0, 1, 1], [], []>} : vector<16x32xf32>, vector<32x64xf32>, vector<16x64xf32> -> vector<16x64xf32>
    %c592 = arith.constant 592 : index
    %c0_38 = arith.constant 0 : index
    %79 = vector.load %arg1[%c592, %c0_38] : memref<616x128xf32, #tpu.memory_space<vmem>>, vector<1x64xf32>
    %80 = vector.broadcast %79 : vector<1x64xf32> to vector<16x64xf32>
    %81 = arith.addf %78, %80 : vector<16x64xf32>
    %cst_39 = arith.constant 0.000000e+00 : f32
    %82 = vector.broadcast %cst_39 : f32 to vector<16x64xf32>
    %83 = arith.maximumf %81, %82 : vector<16x64xf32>
    %c496 = arith.constant 496 : index
    %c0_40 = arith.constant 0 : index
    %84 = vector.load %arg1[%c496, %c0_40] : memref<616x128xf32, #tpu.memory_space<vmem>>, vector<64x32xf32>
    %cst_41 = arith.constant dense<0.000000e+00> : vector<16x32xf32>
    %85 = tpu.matmul %83, %84, %cst_41 {dimension_numbers = #tpu.dot_dimension_numbers<[1], [0], [0], [1], [0, 0, 1, 1], [], []>} : vector<16x64xf32>, vector<64x32xf32>, vector<16x32xf32> -> vector<16x32xf32>
    %86 = vector.broadcast %43 : vector<1x32xf32> to vector<16x32xf32>
    %87 = arith.addf %85, %86 : vector<16x32xf32>
    %88 = arith.addf %76, %87 : vector<16x32xf32>
    %cst_42 = arith.constant dense<0.000000e+00> : vector<16xf32>
    %89 = vector.multi_reduction <add>, %88, %cst_42 [1] : vector<16x32xf32> to vector<16xf32>
    %90 = vector.shape_cast %89 : vector<16xf32> to vector<16x1xf32>
    %cst_43 = arith.constant 3.200000e+01 : f32
    %91 = vector.broadcast %cst_43 : f32 to vector<16x1xf32>
    %92 = arith.divf %90, %91 : vector<16x1xf32>
    %93 = vector.broadcast %92 : vector<16x1xf32> to vector<16x32xf32>
    %94 = arith.subf %88, %93 : vector<16x32xf32>
    %95 = arith.mulf %94, %94 : vector<16x32xf32>
    %cst_44 = arith.constant dense<0.000000e+00> : vector<16xf32>
    %96 = vector.multi_reduction <add>, %95, %cst_44 [1] : vector<16x32xf32> to vector<16xf32>
    %97 = vector.shape_cast %96 : vector<16xf32> to vector<16x1xf32>
    %cst_45 = arith.constant 3.200000e+01 : f32
    %98 = vector.broadcast %cst_45 : f32 to vector<16x1xf32>
    %99 = arith.divf %97, %98 : vector<16x1xf32>
    %100 = vector.broadcast %92 : vector<16x1xf32> to vector<16x32xf32>
    %101 = arith.subf %88, %100 : vector<16x32xf32>
    %cst_46 = arith.constant 9.99999974E-6 : f32
    %102 = vector.broadcast %cst_46 : f32 to vector<16x1xf32>
    %103 = arith.addf %99, %102 : vector<16x1xf32>
    %104 = math.rsqrt %103 : vector<16x1xf32>
    %105 = vector.broadcast %104 : vector<16x1xf32> to vector<16x32xf32>
    %106 = arith.mulf %101, %105 : vector<16x32xf32>
    %107 = vector.broadcast %46 : vector<1x32xf32> to vector<16x32xf32>
    %108 = arith.mulf %106, %107 : vector<16x32xf32>
    %109 = vector.broadcast %47 : vector<1x32xf32> to vector<16x32xf32>
    %110 = arith.addf %108, %109 : vector<16x32xf32>
    %cst_47 = arith.constant dense<0.000000e+00> : vector<16xf32>
    %111 = vector.multi_reduction <add>, %110, %cst_47 [1] : vector<16x32xf32> to vector<16xf32>
    %112 = vector.shape_cast %111 : vector<16xf32> to vector<16x1xf32>
    %cst_48 = arith.constant 3.200000e+01 : f32
    %113 = vector.broadcast %cst_48 : f32 to vector<16x1xf32>
    %114 = arith.divf %112, %113 : vector<16x1xf32>
    %115 = vector.broadcast %114 : vector<16x1xf32> to vector<16x32xf32>
    %116 = arith.subf %110, %115 : vector<16x32xf32>
    %117 = arith.mulf %116, %116 : vector<16x32xf32>
    %cst_49 = arith.constant dense<0.000000e+00> : vector<16xf32>
    %118 = vector.multi_reduction <add>, %117, %cst_49 [1] : vector<16x32xf32> to vector<16xf32>
    %119 = vector.shape_cast %118 : vector<16xf32> to vector<16x1xf32>
    %cst_50 = arith.constant 3.200000e+01 : f32
    %120 = vector.broadcast %cst_50 : f32 to vector<16x1xf32>
    %121 = arith.divf %119, %120 : vector<16x1xf32>
    %122 = vector.broadcast %114 : vector<16x1xf32> to vector<16x32xf32>
    %123 = arith.subf %110, %122 : vector<16x32xf32>
    %cst_51 = arith.constant 9.99999974E-6 : f32
    %124 = vector.broadcast %cst_51 : f32 to vector<16x1xf32>
    %125 = arith.addf %121, %124 : vector<16x1xf32>
    %126 = math.rsqrt %125 : vector<16x1xf32>
    %127 = vector.broadcast %126 : vector<16x1xf32> to vector<16x32xf32>
    %128 = arith.mulf %123, %127 : vector<16x32xf32>
    %129 = vector.broadcast %48 : vector<1x32xf32> to vector<16x32xf32>
    %130 = arith.mulf %128, %129 : vector<16x32xf32>
    %131 = vector.broadcast %49 : vector<1x32xf32> to vector<16x32xf32>
    %132 = arith.addf %130, %131 : vector<16x32xf32>
    %c560 = arith.constant 560 : index
    %c0_52 = arith.constant 0 : index
    %133 = vector.load %arg1[%c560, %c0_52] : memref<616x128xf32, #tpu.memory_space<vmem>>, vector<32x16xf32>
    %cst_53 = arith.constant dense<0.000000e+00> : vector<16x16xf32>
    %134 = tpu.matmul %132, %133, %cst_53 {dimension_numbers = #tpu.dot_dimension_numbers<[1], [0], [0], [1], [0, 0, 1, 1], [], []>} : vector<16x32xf32>, vector<32x16xf32>, vector<16x16xf32> -> vector<16x16xf32>
    %c600 = arith.constant 600 : index
    %c0_54 = arith.constant 0 : index
    %135 = vector.load %arg1[%c600, %c0_54] : memref<616x128xf32, #tpu.memory_space<vmem>>, vector<1x16xf32>
    %136 = vector.broadcast %135 : vector<1x16xf32> to vector<16x16xf32>
    %137 = arith.addf %134, %136 : vector<16x16xf32>
    %c0_55 = arith.constant 0 : index
    %c0_56 = arith.constant 0 : index
    %138 = vector.load %arg2[%c0_55, %c0_56] : memref<16x16xf32, #tpu.memory_space<vmem>>, vector<16x16xf32>
    tpu.vector_store %arg2[%c0_55, %c0_56], %137 {strides = array<i32>} : memref<16x16xf32, #tpu.memory_space<vmem>>, vector<16x16xf32>,
    return
  }
}

</mosaic_0001>

<llo_original>
// kernel: transformer_dual_forward.1
$region0: #{transformer_dual_forward.1}
  #allocation0 [shape = 'u32[]', space=smem, size = 0x4, offset = 0x4, fixed_abs, tag = 'smem constant byte address 0x4 - core index']
  #allocation1 [shape = 'u32[144,128]{1,0:T(1,128)}', space=vmem, size = 0x12000, scoped, tag = 'internal scratch']
  %s0 = inlined_call_operand.vmem [shape: f32[32,16], index: 0, kind: input, shape index: {}]
  %s1 = inlined_call_operand.hbm [shape: f32[616,128], index: 1, kind: input, shape index: {}]
  %s2 = inlined_call_operand.hbm [shape: f32[16,16], index: 2, kind: output, shape index: {}]
  %s3 = sld [smem:[#allocation0]]
  $region22: #{transformer_dual_forward.1} parent=0
    _
  %s5 = ssub.s32 1, %s3
  %s6 = scalar_select 0, %s5, %s3
  $region1: #{transformer_dual_forward.1} parent=0
    #allocation2 [shape = 'u8[315392]{0}', space=vmem, size = 0x4d000, scoped, tag = 'input window, operand 1, single buffered']
    #allocation3 [shape = 's32[1]{0}', space=sflag, size = 0x4, scoped, tag = 'scoped memory for transformer_dual_forward.1']
    #allocation4 [shape = 's32[1]{0}', space=sflag, size = 0x4, scoped, tag = 'scoped memory for transformer_dual_forward.1']
    #allocation5 [shape = 'u8[8192]{0}', space=vmem, size = 0x2000, scoped, tag = 'output window, operand 0, single buffered']
    %7 = vsyncpa [#allocation3], 0
    %8 = vsyncpa [#allocation4], 0
    // Predicated region
    $region2: #{transformer_dual_forward.1} parent=1 // pred_check
      _
    $region3: #{transformer_dual_forward.1} parent=1 // pred_check_branch
      %10 = sbr.rel (0) target = $region5
    $region4: #{transformer_dual_forward.1} parent=1 // pred_region
      _
    $region5: #{transformer_dual_forward.1} parent=1 // pred_fallthru
      _
    // Predicated region
    $region6: #{transformer_dual_forward.1} parent=1 // pred_check
      _
    $region7: #{transformer_dual_forward.1} parent=1 // pred_check_branch
      %12 = sbr.rel (0) target = $region9
    $region8: #{transformer_dual_forward.1} parent=1 // pred_region
      %s14 = ssub.s32 9856, 9856
      %15 = vsyncadd [#allocation3], %s14
      %s16 = sshll.u32 [#allocation2], 4
      %s17 = int_to_ptr.vmem [resolvable:$true] %s16
      %22 = dma.hbm_to_vmem [thread:$0]  %s1, 9856, %s17, [#allocation3], 128, 128, 8
    $region9: #{transformer_dual_forward.1} parent=1 // pred_fallthru
      _
    // Predicated region
    $region10: #{transformer_dual_forward.1} parent=1 // pred_check
      _
    $region11: #{transformer_dual_forward.1} parent=1 // pred_check_branch
      %24 = sbr.rel (0) target = $region13
    $region12: #{transformer_dual_forward.1} parent=1 // pred_region
      %25 = dma.done [#allocation3], 9856
    $region13: #{transformer_dual_forward.1} parent=1 // pred_fallthru
      _
    %v26 = vld [vmem:[%s0] sm:$0xff]
    %v27 = vld [vmem:[%s0 + $0x8] sm:$0xff]
    %v28 = vld [vmem:[%s0 + $0x10] sm:$0xff]
    %v29 = vld [vmem:[%s0 + $0x18] sm:$0xff]
    %v30 = vld [vmem:[#allocation2] sm:$0xff]
    %v31 = vld [vmem:[#allocation2 + $0x8] sm:$0xff]
    %v32 = vld [vmem:[#allocation2 + $0x10] sm:$0xff]
    %v33 = vld [vmem:[#allocation2 + $0x18] sm:$0xff]
    %vm34 = vcmask 130048
    %v36 = vsel %vm34, %v26, 0
    %v39 = vsel %vm34, %v27, 0
    %41 = vmatprep.subr.mxu0 0.0
    %42 = vmatpush1.msra.mxu0 %v30
    %43 = vmatprep.subr.mxu0 0.0
    %44 = vmatpush1.msra.mxu0 %v31
    %45 = vmatprep.subr.mxu0 0.0
    %46 = vmatpush1.msra.mxu0 0.0
    %47 = vmatprep.subr.mxu0 0.0
    %48 = vmatpush1.msra.mxu0 0.0
    %49 = vmatprep.subr.mxu0 0.0
    %50 = vmatpush1.msra.mxu0 0.0
    %51 = vmatprep.subr.mxu0 0.0
    %52 = vmatpush1.msra.mxu0 0.0
    %53 = vmatprep.subr.mxu0 0.0
    %54 = vmatpush1.msra.mxu0 0.0
    %55 = vmatprep.subr.mxu0 0.0
    %56 = vmatpush1.msra.mxu0 0.0
    %57 = vmatprep.subr.mxu0 0.0
    %58 = vmatpush1.msra.mxu0 0.0
    %59 = vmatprep.subr.mxu0 0.0
    %60 = vmatpush1.msra.mxu0 0.0
    %61 = vmatprep.subr.mxu0 0.0
    %62 = vmatpush1.msra.mxu0 0.0
    %63 = vmatprep.subr.mxu0 0.0
    %64 = vmatpush1.msra.mxu0 0.0
    %65 = vmatprep.subr.mxu0 0.0
    %66 = vmatpush1.msra.mxu0 0.0
    %67 = vmatprep.subr.mxu0 0.0
    %68 = vmatpush1.msra.mxu0 0.0
    %69 = vmatprep.subr.mxu0 0.0
    %70 = vmatpush1.msra.mxu0 0.0
    %71 = vmatprep.subr.mxu0 0.0
    %72 = vmatpush1.msra.mxu0 0.0
    %73 = vmatprep.subr.mxu0 0.0
    %74 = vmatpush1.msra.mxu0 0.0
    %75 = vmatprep.subr.mxu0 0.0
    %76 = vmatpush1.msra.mxu0 0.0
    %77 = vmatprep.subr.mxu0 0.0
    %78 = vmatpush1.msra.mxu0 0.0
    %79 = vmatprep.subr.mxu0 0.0
    %80 = vmatpush1.msra.mxu0 0.0
    %81 = vmatprep.subr.mxu0 0.0
    %82 = vmatpush1.msra.mxu0 0.0
    %83 = vmatprep.subr.mxu0 0.0
    %84 = vmatpush1.msra.mxu0 0.0
    %85 = vmatprep.subr.mxu0 0.0
    %86 = vmatpush1.msra.mxu0 0.0
    %87 = vmatprep.subr.mxu0 0.0
    %88 = vmatpush1.msra.mxu0 0.0
    %89 = vmatprep.subr.mxu0 0.0
    %90 = vmatpush1.msra.mxu0 0.0
    %91 = vmatprep.subr.mxu0 0.0
    %92 = vmatpush1.msra.mxu0 0.0
    %93 = vmatprep.subr.mxu0 0.0
    %94 = vmatpush1.msra.mxu0 0.0
    %95 = vmatprep.subr.mxu0 0.0
    %96 = vmatpush1.msra.mxu0 0.0
    %97 = vmatprep.subr.mxu0 0.0
    %98 = vmatpush1.msra.mxu0 0.0
    %99 = vmatprep.subr.mxu0 0.0
    %100 = vmatpush1.msra.mxu0 0.0
    %101 = vmatprep.subr.mxu0 0.0
    %102 = vmatpush1.msra.mxu0 0.0
    %103 = vmatprep.subr.mxu0 0.0
    %104 = vmatpush1.msra.mxu0 0.0
    %105 = vmatprep.mubr.f32.mxu0 0.0
    %106 = vmatmul.mubr.f32.gmra.mrb[0].mxu0 %v36
    %v107 = vpop.f32.mrb[0].mxu0
    %v108 = vadd.f32 %v32, %v107
    %v109 = vpop.f32.mrb[0].mxu0
    %110 = vmatprep.mubr.f32.mxu0 0.0
    %111 = vmatmul.mubr.f32.gmra.mrb[0].mxu0 %v39
    %v112 = vpop.f32.mrb[0].mxu0
    %v113 = vadd.f32 %v33, %v112
    %v114 = vpop.f32.mrb[0].mxu0
    %115 = vdwg.mxu0
    %v116 = vld [vmem:[#allocation2 + $0x20] sm:$0xff]
    %v117 = vld [vmem:[#allocation2 + $0x28] sm:$0xff]
    %v118 = vld [vmem:[#allocation2 + $0x30] sm:$0xff]
    %v119 = vld [vmem:[#allocation2 + $0x38] sm:$0xff]
    %120 = vmatprep.subr.mxu0 0.0
    %121 = vmatpush1.msra.mxu0 %v116
    %122 = vmatprep.subr.mxu0 0.0
    %123 = vmatpush1.msra.mxu0 %v117
    %124 = vmatprep.subr.mxu0 0.0
    %125 = vmatpush1.msra.mxu0 0.0
    %126 = vmatprep.subr.mxu0 0.0
    %127 = vmatpush1.msra.mxu0 0.0
    %128 = vmatprep.subr.mxu0 0.0
    %129 = vmatpush1.msra.mxu0 0.0
    %130 = vmatprep.subr.mxu0 0.0
    %131 = vmatpush1.msra.mxu0 0.0
    %132 = vmatprep.subr.mxu0 0.0
    %133 = vmatpush1.msra.mxu0 0.0
    %134 = vmatprep.subr.mxu0 0.0
    %135 = vmatpush1.msra.mxu0 0.0
    %136 = vmatprep.subr.mxu0 0.0
    %137 = vmatpush1.msra.mxu0 0.0
    %138 = vmatprep.subr.mxu0 0.0
    %139 = vmatpush1.msra.mxu0 0.0
    %140 = vmatprep.subr.mxu0 0.0
    %141 = vmatpush1.msra.mxu0 0.0
    %142 = vmatprep.subr.mxu0 0.0
    %143 = vmatpush1.msra.mxu0 0.0
    %144 = vmatprep.subr.mxu0 0.0
    %145 = vmatpush1.msra.mxu0 0.0
    %146 = vmatprep.subr.mxu0 0.0
    %147 = vmatpush1.msra.mxu0 0.0
    %148 = vmatprep.subr.mxu0 0.0
    %149 = vmatpush1.msra.mxu0 0.0
    %150 = vmatprep.subr.mxu0 0.0
    %151 = vmatpush1.msra.mxu0 0.0
    %152 = vmatprep.subr.mxu0 0.0
    %153 = vmatpush1.msra.mxu0 0.0
    %154 = vmatprep.subr.mxu0 0.0
    %155 = vmatpush1.msra.mxu0 0.0
    %156 = vmatprep.subr.mxu0 0.0
    %157 = vmatpush1.msra.mxu0 0.0
    %158 = vmatprep.subr.mxu0 0.0
    %159 = vmatpush1.msra.mxu0 0.0
    %160 = vmatprep.subr.mxu0 0.0
    %161 = vmatpush1.msra.mxu0 0.0
    %162 = vmatprep.subr.mxu0 0.0
    %163 = vmatpush1.msra.mxu0 0.0
    %164 = vmatprep.subr.mxu0 0.0
    %165 = vmatpush1.msra.mxu0 0.0
    %166 = vmatprep.subr.mxu0 0.0
    %167 = vmatpush1.msra.mxu0 0.0
    %168 = vmatprep.subr.mxu0 0.0
    %169 = vmatpush1.msra.mxu0 0.0
    %170 = vmatprep.subr.mxu0 0.0
    %171 = vmatpush1.msra.mxu0 0.0
    %172 = vmatprep.subr.mxu0 0.0
    %173 = vmatpush1.msra.mxu0 0.0
    %174 = vmatprep.subr.mxu0 0.0
    %175 = vmatpush1.msra.mxu0 0.0
    %176 = vmatprep.subr.mxu0 0.0
    %177 = vmatpush1.msra.mxu0 0.0
    %178 = vmatprep.subr.mxu0 0.0
    %179 = vmatpush1.msra.mxu0 0.0
    %180 = vmatprep.subr.mxu0 0.0
    %181 = vmatpush1.msra.mxu0 0.0
    %182 = vmatprep.subr.mxu0 0.0
    %183 = vmatpush1.msra.mxu0 0.0
    %184 = vmatprep.mubr.f32.mxu0 0.0
    %185 = vmatmul.mubr.f32.gmra.mrb[0].mxu0 %v36
    %v186 = vpop.f32.mrb[0].mxu0
    %v187 = vadd.f32 %v118, %v186
    %v188 = vpop.f32.mrb[0].mxu0
    %189 = vmatprep.mubr.f32.mxu0 0.0
    %190 = vmatmul.mubr.f32.gmra.mrb[0].mxu0 %v39
    %v191 = vpop.f32.mrb[0].mxu0
    %v192 = vadd.f32 %v119, %v191
    %v193 = vpop.f32.mrb[0].mxu0
    %194 = vdwg.mxu0
    %v195 = vld [vmem:[#allocation2 + $0x40] sm:$0xff]
    %v196 = vld [vmem:[#allocation2 + $0x48] sm:$0xff]
    %v197 = vld [vmem:[#allocation2 + $0x50] sm:$0xff]
    %v198 = vld [vmem:[#allocation2 + $0x58] sm:$0xff]
    %v200 = vsel %vm34, %v195, 0
    %v203 = vsel %vm34, %v196, 0
    %v206 = vsel %vm34, %v197, 0
    %v209 = vsel %vm34, %v198, 0
    %211 = vmatprep.subr.mxu0 0.0
    %212 = vmatpush1.msra.mxu0 %v28
    %213 = vmatprep.subr.mxu0 0.0
    %214 = vmatpush1.msra.mxu0 %v29
    %215 = vmatprep.subr.mxu0 0.0
    %216 = vmatpush1.msra.mxu0 0.0
    %217 = vmatprep.subr.mxu0 0.0
    %218 = vmatpush1.msra.mxu0 0.0
    %219 = vmatprep.subr.mxu0 0.0
    %220 = vmatpush1.msra.mxu0 0.0
    %221 = vmatprep.subr.mxu0 0.0
    %222 = vmatpush1.msra.mxu0 0.0
    %223 = vmatprep.subr.mxu0 0.0
    %224 = vmatpush1.msra.mxu0 0.0
    %225 = vmatprep.subr.mxu0 0.0
    %226 = vmatpush1.msra.mxu0 0.0
    %227 = vmatprep.subr.mxu0 0.0
    %228 = vmatpush1.msra.mxu0 0.0
    %229 = vmatprep.subr.mxu0 0.0
    %230 = vmatpush1.msra.mxu0 0.0
    %231 = vmatprep.subr.mxu0 0.0
    %232 = vmatpush1.msra.mxu0 0.0
    %233 = vmatprep.subr.mxu0 0.0
    %234 = vmatpush1.msra.mxu0 0.0
    %235 = vmatprep.subr.mxu0 0.0
    %236 = vmatpush1.msra.mxu0 0.0
    %237 = vmatprep.subr.mxu0 0.0
    %238 = vmatpush1.msra.mxu0 0.0
    %239 = vmatprep.subr.mxu0 0.0
    %240 = vmatpush1.msra.mxu0 0.0
    %241 = vmatprep.subr.mxu0 0.0
    %242 = vmatpush1.msra.mxu0 0.0
    %243 = vmatprep.subr.mxu0 0.0
    %244 = vmatpush1.msra.mxu0 0.0
    %245 = vmatprep.subr.mxu0 0.0
    %246 = vmatpush1.msra.mxu0 0.0
    %247 = vmatprep.subr.mxu0 0.0
    %248 = vmatpush1.msra.mxu0 0.0
    %249 = vmatprep.subr.mxu0 0.0
    %250 = vmatpush1.msra.mxu0 0.0
    %251 = vmatprep.subr.mxu0 0.0
    %252 = vmatpush1.msra.mxu0 0.0
    %253 = vmatprep.subr.mxu0 0.0
    %254 = vmatpush1.msra.mxu0 0.0
    %255 = vmatprep.subr.mxu0 0.0
    %256 = vmatpush1.msra.mxu0 0.0
    %257 = vmatprep.subr.mxu0 0.0
    %258 = vmatpush1.msra.mxu0 0.0
    %259 = vmatprep.subr.mxu0 0.0
    %260 = vmatpush1.msra.mxu0 0.0
    %261 = vmatprep.subr.mxu0 0.0
    %262 = vmatpush1.msra.mxu0 0.0
    %263 = vmatprep.subr.mxu0 0.0
    %264 = vmatpush1.msra.mxu0 0.0
    %265 = vmatprep.subr.mxu0 0.0
    %266 = vmatpush1.msra.mxu0 0.0
    %267 = vmatprep.subr.mxu0 0.0
    %268 = vmatpush1.msra.mxu0 0.0
    %269 = vmatprep.subr.mxu0 0.0
    %270 = vmatpush1.msra.mxu0 0.0
    %271 = vmatprep.subr.mxu0 0.0
    %272 = vmatpush1.msra.mxu0 0.0
    %273 = vmatprep.subr.mxu0 0.0
    %274 = vmatpush1.msra.mxu0 0.0
    %275 = vmatprep.mubr.f32.mxu0 0.0
    %276 = vmatmul.mubr.f32.gmra.mrb[0].mxu0 %v200
    %v277 = vpop.f32.mrb[0].mxu0
    %v278 = vadd.f32 0.0, %v277
    %v279 = vpop.f32.mrb[0].mxu0
    %280 = vmatprep.mubr.f32.mxu0 0.0
    %281 = vmatmul.mubr.f32.gmra.mrb[0].mxu0 %v203
    %v282 = vpop.f32.mrb[0].mxu0
    %v283 = vadd.f32 0.0, %v282
    %v284 = vpop.f32.mrb[0].mxu0
    %285 = vmatprep.mubr.f32.mxu0 0.0
    %286 = vmatmul.mubr.f32.gmra.mrb[0].mxu0 %v206
    %v287 = vpop.f32.mrb[0].mxu0
    %v288 = vadd.f32 0.0, %v287
    %v289 = vpop.f32.mrb[0].mxu0
    %290 = vmatprep.mubr.f32.mxu0 0.0
    %291 = vmatmul.mubr.f32.gmra.mrb[0].mxu0 %v209
    %v292 = vpop.f32.mrb[0].mxu0
    %v293 = vadd.f32 0.0, %v292
    %v294 = vpop.f32.mrb[0].mxu0
    %295 = vdwg.mxu0
    %v296 = vld [vmem:[#allocation2 + $0x60] sm:$0xff]
    %v297 = vld [vmem:[#allocation2 + $0x68] sm:$0xff]
    %v299 = vsel %vm34, %v278, 0
    %v302 = vsel %vm34, %v283, 0
    %v305 = vsel %vm34, %v288, 0
    %v308 = vsel %vm34, %v293, 0
    %310 = vmatprep.subr.mxu0 0.0
    %311 = vmatpush1.msra.mxu0 %v296
    %312 = vmatprep.subr.mxu0 0.0
    %313 = vmatpush1.msra.mxu0 %v297
    %314 = vmatprep.subr.mxu0 0.0
    %315 = vmatpush1.msra.mxu0 0.0
    %316 = vmatprep.subr.mxu0 0.0
    %317 = vmatpush1.msra.mxu0 0.0
    %318 = vmatprep.subr.mxu0 0.0
    %319 = vmatpush1.msra.mxu0 0.0
    %320 = vmatprep.subr.mxu0 0.0
    %321 = vmatpush1.msra.mxu0 0.0
    %322 = vmatprep.subr.mxu0 0.0
    %323 = vmatpush1.msra.mxu0 0.0
    %324 = vmatprep.subr.mxu0 0.0
    %325 = vmatpush1.msra.mxu0 0.0
    %326 = vmatprep.subr.mxu0 0.0
    %327 = vmatpush1.msra.mxu0 0.0
    %328 = vmatprep.subr.mxu0 0.0
    %329 = vmatpush1.msra.mxu0 0.0
    %330 = vmatprep.subr.mxu0 0.0
    %331 = vmatpush1.msra.mxu0 0.0
    %332 = vmatprep.subr.mxu0 0.0
    %333 = vmatpush1.msra.mxu0 0.0
    %334 = vmatprep.subr.mxu0 0.0
    %335 = vmatpush1.msra.mxu0 0.0
    %336 = vmatprep.subr.mxu0 0.0
    %337 = vmatpush1.msra.mxu0 0.0
    %338 = vmatprep.subr.mxu0 0.0
    %339 = vmatpush1.msra.mxu0 0.0
    %340 = vmatprep.subr.mxu0 0.0
    %341 = vmatpush1.msra.mxu0 0.0
    %342 = vmatprep.subr.mxu0 0.0
    %343 = vmatpush1.msra.mxu0 0.0
    %344 = vmatprep.subr.mxu0 0.0
    %345 = vmatpush1.msra.mxu0 0.0
    %346 = vmatprep.subr.mxu0 0.0
    %347 = vmatpush1.msra.mxu0 0.0
    %348 = vmatprep.subr.mxu0 0.0
    %349 = vmatpush1.msra.mxu0 0.0
    %350 = vmatprep.subr.mxu0 0.0
    %351 = vmatpush1.msra.mxu0 0.0
    %352 = vmatprep.subr.mxu0 0.0
    %353 = vmatpush1.msra.mxu0 0.0
    %354 = vmatprep.subr.mxu0 0.0
    %355 = vmatpush1.msra.mxu0 0.0
    %356 = vmatprep.subr.mxu0 0.0
    %357 = vmatpush1.msra.mxu0 0.0
    %358 = vmatprep.subr.mxu0 0.0
    %359 = vmatpush1.msra.mxu0 0.0
    %360 = vmatprep.subr.mxu0 0.0
    %361 = vmatpush1.msra.mxu0 0.0
    %362 = vmatprep.subr.mxu0 0.0
    %363 = vmatpush1.msra.mxu0 0.0
    %364 = vmatprep.subr.mxu0 0.0
    %365 = vmatpush1.msra.mxu0 0.0
    %366 = vmatprep.subr.mxu0 0.0
    %367 = vmatpush1.msra.mxu0 0.0
    %368 = vmatprep.subr.mxu0 0.0
    %369 = vmatpush1.msra.mxu0 0.0
    %370 = vmatprep.subr.mxu0 0.0
    %371 = vmatpush1.msra.mxu0 0.0
    %372 = vmatprep.subr.mxu0 0.0
    %373 = vmatpush1.msra.mxu0 0.0
    %374 = vmatprep.mubr.f32.mxu0 0.0
    %375 = vmatmul.mubr.f32.gmra.mrb[0].mxu0 %v299
    %v376 = vpop.f32.mrb[0].mxu0
    %v377 = vadd.f32 0.0, %v376
    %v378 = vpop.f32.mrb[0].mxu0
    %379 = vmatprep.mubr.f32.mxu0 0.0
    %380 = vmatmul.mubr.f32.gmra.mrb[0].mxu0 %v302
    %v381 = vpop.f32.mrb[0].mxu0
    %v382 = vadd.f32 0.0, %v381
    %v383 = vpop.f32.mrb[0].mxu0
    %384 = vmatprep.mubr.f32.mxu0 0.0
    %385 = vmatmul.mubr.f32.gmra.mrb[0].mxu0 %v305
    %v386 = vpop.f32.mrb[0].mxu0
    %v387 = vadd.f32 0.0, %v386
    %v388 = vpop.f32.mrb[0].mxu0
    %389 = vmatprep.mubr.f32.mxu0 0.0
    %390 = vmatmul.mubr.f32.gmra.mrb[0].mxu0 %v308
    %v391 = vpop.f32.mrb[0].mxu0
    %v392 = vadd.f32 0.0, %v391
    %v393 = vpop.f32.mrb[0].mxu0
    %394 = vdwg.mxu0
    %v395 = vld [vmem:[#allocation2 + $0x70] sm:$0xff]
    %v396 = vld [vmem:[#allocation2 + $0x78] sm:$0xff]
    %v397 = vld [vmem:[#allocation2 + $0x80] sm:$0xff]
    %v398 = vld [vmem:[#allocation2 + $0x88] sm:$0xff]
    %v399 = vmul.f32 %v377, %v395
    %v400 = vmul.f32 %v382, %v396
    %v401 = vmul.f32 %v387, %v397
    %v402 = vmul.f32 %v392, %v398
    %v403 = vld [vmem:[#allocation2 + $0x90] sm:$0xff]
    %v404 = vld [vmem:[#allocation2 + $0x98] sm:$0xff]
    %v405 = vld [vmem:[#allocation2 + $0xa0] sm:$0xff]
    %v406 = vld [vmem:[#allocation2 + $0xa8] sm:$0xff]
    %v407 = vadd.f32 %v399, %v403
    %v408 = vadd.f32 %v400, %v404
    %v409 = vadd.f32 %v401, %v405
    %v410 = vadd.f32 %v402, %v406
    %v411 = vld [vmem:[#allocation2 + $0x110] sm:$0xff]
    %v412 = vld [vmem:[#allocation2 + $0x118] sm:$0xff]
    %v413 = vld [vmem:[#allocation2 + $0x120] sm:$0xff]
    %v414 = vld [vmem:[#allocation2 + $0x128] sm:$0xff]
    %415 = vmatprep.subr.mxu0 0.0
    %416 = vmatpush1.msra.mxu0 %v411
    %417 = vmatprep.subr.mxu0 0.0
    %418 = vmatpush1.msra.mxu0 %v412
    %419 = vmatprep.subr.mxu0 0.0
    %420 = vmatpush1.msra.mxu0 0.0
    %421 = vmatprep.subr.mxu0 0.0
    %422 = vmatpush1.msra.mxu0 0.0
    %423 = vmatprep.subr.mxu0 0.0
    %424 = vmatpush1.msra.mxu0 0.0
    %425 = vmatprep.subr.mxu0 0.0
    %426 = vmatpush1.msra.mxu0 0.0
    %427 = vmatprep.subr.mxu0 0.0
    %428 = vmatpush1.msra.mxu0 0.0
    %429 = vmatprep.subr.mxu0 0.0
    %430 = vmatpush1.msra.mxu0 0.0
    %431 = vmatprep.subr.mxu0 0.0
    %432 = vmatpush1.msra.mxu0 0.0
    %433 = vmatprep.subr.mxu0 0.0
    %434 = vmatpush1.msra.mxu0 0.0
    %435 = vmatprep.subr.mxu0 0.0
    %436 = vmatpush1.msra.mxu0 0.0
    %437 = vmatprep.subr.mxu0 0.0
    %438 = vmatpush1.msra.mxu0 0.0
    %439 = vmatprep.subr.mxu0 0.0
    %440 = vmatpush1.msra.mxu0 0.0
    %441 = vmatprep.subr.mxu0 0.0
    %442 = vmatpush1.msra.mxu0 0.0
    %443 = vmatprep.subr.mxu0 0.0
    %444 = vmatpush1.msra.mxu0 0.0
    %445 = vmatprep.subr.mxu0 0.0
    %446 = vmatpush1.msra.mxu0 0.0
    %447 = vmatprep.subr.mxu0 0.0
    %448 = vmatpush1.msra.mxu0 0.0
    %449 = vmatprep.subr.mxu0 0.0
    %450 = vmatpush1.msra.mxu0 0.0
    %451 = vmatprep.subr.mxu0 0.0
    %452 = vmatpush1.msra.mxu0 0.0
    %453 = vmatprep.subr.mxu0 0.0
    %454 = vmatpush1.msra.mxu0 0.0
    %455 = vmatprep.subr.mxu0 0.0
    %456 = vmatpush1.msra.mxu0 0.0
    %457 = vmatprep.subr.mxu0 0.0
    %458 = vmatpush1.msra.mxu0 0.0
    %459 = vmatprep.subr.mxu0 0.0
    %460 = vmatpush1.msra.mxu0 0.0
    %461 = vmatprep.subr.mxu0 0.0
    %462 = vmatpush1.msra.mxu0 0.0
    %463 = vmatprep.subr.mxu0 0.0
    %464 = vmatpush1.msra.mxu0 0.0
    %465 = vmatprep.subr.mxu0 0.0
    %466 = vmatpush1.msra.mxu0 0.0
    %467 = vmatprep.subr.mxu0 0.0
    %468 = vmatpush1.msra.mxu0 0.0
    %469 = vmatprep.subr.mxu0 0.0
    %470 = vmatpush1.msra.mxu0 0.0
    %471 = vmatprep.subr.mxu0 0.0
    %472 = vmatpush1.msra.mxu0 0.0
    %473 = vmatprep.subr.mxu0 0.0
    %474 = vmatpush1.msra.mxu0 0.0
    %475 = vmatprep.subr.mxu0 0.0
    %476 = vmatpush1.msra.mxu0 0.0
    %477 = vmatprep.subr.mxu0 0.0
    %478 = vmatpush1.msra.mxu0 0.0
    %479 = vmatprep.mubr.f32.mxu0 0.0
    %480 = vmatmul.mubr.f32.gmra.mrb[0].mxu0 %v36
    %v481 = vpop.f32.mrb[0].mxu0
    %v482 = vadd.f32 %v413, %v481
    %v483 = vpop.f32.mrb[0].mxu0
    %484 = vmatprep.mubr.f32.mxu0 0.0
    %485 = vmatmul.mubr.f32.gmra.mrb[0].mxu0 %v39
    %v486 = vpop.f32.mrb[0].mxu0
    %v487 = vadd.f32 %v414, %v486
    %v488 = vpop.f32.mrb[0].mxu0
    %489 = vdwg.mxu0
    %v490 = vld [vmem:[#allocation2 + $0x130] sm:$0xff]
    %v491 = vld [vmem:[#allocation2 + $0x138] sm:$0xff]
    %v492 = vld [vmem:[#allocation2 + $0x140] sm:$0xff]
    %v493 = vld [vmem:[#allocation2 + $0x148] sm:$0xff]
    %v494 = vld [vmem:[#allocation2 + $0x150] sm:$0xff]
    %v495 = vld [vmem:[#allocation2 + $0x158] sm:$0xff]
    %v496 = vld [vmem:[#allocation2 + $0x160] sm:$0xff]
    %v497 = vld [vmem:[#allocation2 + $0x168] sm:$0xff]
    %v499 = vsel %vm34, %v490, 0
    %v502 = vsel %vm34, %v491, 0
    %v505 = vsel %vm34, %v492, 0
    %v508 = vsel %vm34, %v493, 0
    %v511 = vsel %vm34, %v494, 0
    %v514 = vsel %vm34, %v495, 0
    %v517 = vsel %vm34, %v496, 0
    %v520 = vsel %vm34, %v497, 0
    %522 = vmatprep.subr.mxu0 0.0
    %523 = vmatpush1.msra.mxu0 %v482
    %524 = vmatprep.subr.mxu0 0.0
    %525 = vmatpush1.msra.mxu0 %v487
    %526 = vmatprep.subr.mxu0 0.0
    %527 = vmatpush1.msra.mxu0 0.0
    %528 = vmatprep.subr.mxu0 0.0
    %529 = vmatpush1.msra.mxu0 0.0
    %530 = vmatprep.subr.mxu0 0.0
    %531 = vmatpush1.msra.mxu0 0.0
    %532 = vmatprep.subr.mxu0 0.0
    %533 = vmatpush1.msra.mxu0 0.0
    %534 = vmatprep.subr.mxu0 0.0
    %535 = vmatpush1.msra.mxu0 0.0
    %536 = vmatprep.subr.mxu0 0.0
    %537 = vmatpush1.msra.mxu0 0.0
    %538 = vmatprep.subr.mxu0 0.0
    %539 = vmatpush1.msra.mxu0 0.0
    %540 = vmatprep.subr.mxu0 0.0
    %541 = vmatpush1.msra.mxu0 0.0
    %542 = vmatprep.subr.mxu0 0.0
    %543 = vmatpush1.msra.mxu0 0.0
    %544 = vmatprep.subr.mxu0 0.0
    %545 = vmatpush1.msra.mxu0 0.0
    %546 = vmatprep.subr.mxu0 0.0
    %547 = vmatpush1.msra.mxu0 0.0
    %548 = vmatprep.subr.mxu0 0.0
    %549 = vmatpush1.msra.mxu0 0.0
    %550 = vmatprep.subr.mxu0 0.0
    %551 = vmatpush1.msra.mxu0 0.0
    %552 = vmatprep.subr.mxu0 0.0
    %553 = vmatpush1.msra.mxu0 0.0
    %554 = vmatprep.subr.mxu0 0.0
    %555 = vmatpush1.msra.mxu0 0.0
    %556 = vmatprep.subr.mxu0 0.0
    %557 = vmatpush1.msra.mxu0 0.0
    %558 = vmatprep.subr.mxu0 0.0
    %559 = vmatpush1.msra.mxu0 0.0
    %560 = vmatprep.subr.mxu0 0.0
    %561 = vmatpush1.msra.mxu0 0.0
    %562 = vmatprep.subr.mxu0 0.0
    %563 = vmatpush1.msra.mxu0 0.0
    %564 = vmatprep.subr.mxu0 0.0
    %565 = vmatpush1.msra.mxu0 0.0
    %566 = vmatprep.subr.mxu0 0.0
    %567 = vmatpush1.msra.mxu0 0.0
    %568 = vmatprep.subr.mxu0 0.0
    %569 = vmatpush1.msra.mxu0 0.0
    %570 = vmatprep.subr.mxu0 0.0
    %571 = vmatpush1.msra.mxu0 0.0
    %572 = vmatprep.subr.mxu0 0.0
    %573 = vmatpush1.msra.mxu0 0.0
    %574 = vmatprep.subr.mxu0 0.0
    %575 = vmatpush1.msra.mxu0 0.0
    %576 = vmatprep.subr.mxu0 0.0
    %577 = vmatpush1.msra.mxu0 0.0
    %578 = vmatprep.subr.mxu0 0.0
    %579 = vmatpush1.msra.mxu0 0.0
    %580 = vmatprep.subr.mxu0 0.0
    %581 = vmatpush1.msra.mxu0 0.0
    %582 = vmatprep.subr.mxu0 0.0
    %583 = vmatpush1.msra.mxu0 0.0
    %584 = vmatprep.subr.mxu0 0.0
    %585 = vmatpush1.msra.mxu0 0.0
    %586 = vmatprep.mubr.f32.mxu0 0.0
    %587 = vmatmul.mubr.f32.gmra.mrb[0].mxu0 %v499
    %v588 = vpop.f32.mrb[0].mxu0
    %v589 = vadd.f32 0.0, %v588
    %v590 = vpop.f32.mrb[0].mxu0
    %591 = vmatprep.mubr.f32.mxu0 0.0
    %592 = vmatmul.mubr.f32.gmra.mrb[0].mxu0 %v502
    %v593 = vpop.f32.mrb[0].mxu0
    %v594 = vadd.f32 0.0, %v593
    %v595 = vpop.f32.mrb[0].mxu0
    %596 = vmatprep.mubr.f32.mxu0 0.0
    %597 = vmatmul.mubr.f32.gmra.mrb[0].mxu0 %v505
    %v598 = vpop.f32.mrb[0].mxu0
    %v599 = vadd.f32 0.0, %v598
    %v600 = vpop.f32.mrb[0].mxu0
    %601 = vmatprep.mubr.f32.mxu0 0.0
    %602 = vmatmul.mubr.f32.gmra.mrb[0].mxu0 %v508
    %v603 = vpop.f32.mrb[0].mxu0
    %v604 = vadd.f32 0.0, %v603
    %v605 = vpop.f32.mrb[0].mxu0
    %606 = vmatprep.mubr.f32.mxu0 0.0
    %607 = vmatmul.mubr.f32.gmra.mrb[0].mxu0 %v511
    %v608 = vpop.f32.mrb[0].mxu0
    %v609 = vadd.f32 0.0, %v608
    %v610 = vpop.f32.mrb[0].mxu0
    %611 = vmatprep.mubr.f32.mxu0 0.0
    %612 = vmatmul.mubr.f32.gmra.mrb[0].mxu0 %v514
    %v613 = vpop.f32.mrb[0].mxu0
    %v614 = vadd.f32 0.0, %v613
    %v615 = vpop.f32.mrb[0].mxu0
    %616 = vmatprep.mubr.f32.mxu0 0.0
    %617 = vmatmul.mubr.f32.gmra.mrb[0].mxu0 %v517
    %v618 = vpop.f32.mrb[0].mxu0
    %v619 = vadd.f32 0.0, %v618
    %v620 = vpop.f32.mrb[0].mxu0
    %621 = vmatprep.mubr.f32.mxu0 0.0
    %622 = vmatmul.mubr.f32.gmra.mrb[0].mxu0 %v520
    %v623 = vpop.f32.mrb[0].mxu0
    %v624 = vadd.f32 0.0, %v623
    %v625 = vpop.f32.mrb[0].mxu0
    %626 = vdwg.mxu0
    %v627 = vld [vmem:[#allocation2 + $0x170] sm:$0xff]
    %v628 = vld [vmem:[#allocation2 + $0x178] sm:$0xff]
    %v629 = vld [vmem:[#allocation2 + $0x180] sm:$0xff]
    %v630 = vld [vmem:[#allocation2 + $0x188] sm:$0xff]
    %v631 = vld [vmem:[#allocation2 + $0x190] sm:$0xff]
    %v632 = vld [vmem:[#allocation2 + $0x198] sm:$0xff]
    %v633 = vld [vmem:[#allocation2 + $0x1a0] sm:$0xff]
    %v634 = vld [vmem:[#allocation2 + $0x1a8] sm:$0xff]
    %v635 = vmul.f32 %v589, %v627
    %v636 = vmul.f32 %v594, %v628
    %v637 = vmul.f32 %v599, %v629
    %v638 = vmul.f32 %v604, %v630
    %v639 = vmul.f32 %v609, %v631
    %v640 = vmul.f32 %v614, %v632
    %v641 = vmul.f32 %v619, %v633
    %v642 = vmul.f32 %v624, %v634
    %v643 = vld [vmem:[#allocation2 + $0xb0] sm:$0xff]
    %v644 = vld [vmem:[#allocation2 + $0xb8] sm:$0xff]
    %vm645 = vcmask 261120
    %v647 = vsel %vm645, %v187, 0
    %v650 = vsel %vm645, %v192, 0
    %652 = vmatprep.subr.mxu0 0.0
    %653 = vmatpush1.msra.mxu0 %v407
    %654 = vmatprep.subr.mxu0 0.0
    %655 = vmatpush1.msra.mxu0 %v408
    %656 = vmatprep.subr.mxu0 0.0
    %657 = vmatpush1.msra.mxu0 %v409
    %658 = vmatprep.subr.mxu0 0.0
    %659 = vmatpush1.msra.mxu0 %v410
    %660 = vmatprep.subr.mxu0 0.0
    %661 = vmatpush1.msra.mxu0 0.0
    %662 = vmatprep.subr.mxu0 0.0
    %663 = vmatpush1.msra.mxu0 0.0
    %664 = vmatprep.subr.mxu0 0.0
    %665 = vmatpush1.msra.mxu0 0.0
    %666 = vmatprep.subr.mxu0 0.0
    %667 = vmatpush1.msra.mxu0 0.0
    %668 = vmatprep.subr.mxu0 0.0
    %669 = vmatpush1.msra.mxu0 0.0
    %670 = vmatprep.subr.mxu0 0.0
    %671 = vmatpush1.msra.mxu0 0.0
    %672 = vmatprep.subr.mxu0 0.0
    %673 = vmatpush1.msra.mxu0 0.0
    %674 = vmatprep.subr.mxu0 0.0
    %675 = vmatpush1.msra.mxu0 0.0
    %676 = vmatprep.subr.mxu0 0.0
    %677 = vmatpush1.msra.mxu0 0.0
    %678 = vmatprep.subr.mxu0 0.0
    %679 = vmatpush1.msra.mxu0 0.0
    %680 = vmatprep.subr.mxu0 0.0
    %681 = vmatpush1.msra.mxu0 0.0
    %682 = vmatprep.subr.mxu0 0.0
    %683 = vmatpush1.msra.mxu0 0.0
    %684 = vmatprep.subr.mxu0 0.0
    %685 = vmatpush1.msra.mxu0 0.0
    %686 = vmatprep.subr.mxu0 0.0
    %687 = vmatpush1.msra.mxu0 0.0
    %688 = vmatprep.subr.mxu0 0.0
    %689 = vmatpush1.msra.mxu0 0.0
    %690 = vmatprep.subr.mxu0 0.0
    %691 = vmatpush1.msra.mxu0 0.0
    %692 = vmatprep.subr.mxu0 0.0
    %693 = vmatpush1.msra.mxu0 0.0
    %694 = vmatprep.subr.mxu0 0.0
    %695 = vmatpush1.msra.mxu0 0.0
    %696 = vmatprep.subr.mxu0 0.0
    %697 = vmatpush1.msra.mxu0 0.0
    %698 = vmatprep.subr.mxu0 0.0
    %699 = vmatpush1.msra.mxu0 0.0
    %700 = vmatprep.subr.mxu0 0.0
    %701 = vmatpush1.msra.mxu0 0.0
    %702 = vmatprep.subr.mxu0 0.0
    %703 = vmatpush1.msra.mxu0 0.0
    %704 = vmatprep.subr.mxu0 0.0
    %705 = vmatpush1.msra.mxu0 0.0
    %706 = vmatprep.subr.mxu0 0.0
    %707 = vmatpush1.msra.mxu0 0.0
    %708 = vmatprep.subr.mxu0 0.0
    %709 = vmatpush1.msra.mxu0 0.0
    %710 = vmatprep.subr.mxu0 0.0
    %711 = vmatpush1.msra.mxu0 0.0
    %712 = vmatprep.subr.mxu0 0.0
    %713 = vmatpush1.msra.mxu0 0.0
    %714 = vmatprep.subr.mxu0 0.0
    %715 = vmatpush1.msra.mxu0 0.0
    %716 = vmatprep.mubr.f32.mxu0 0.0
    %717 = vmatmul.mubr.f32.gmra.mrb[0].mxu0 %v647
    %v718 = vpop.f32.mrb[0].mxu0
    %v719 = vadd.f32 %v643, %v718
    %v720 = vpop.f32.mrb[0].mxu0
    %721 = vmatprep.mubr.f32.mxu0 0.0
    %722 = vmatmul.mubr.f32.gmra.mrb[0].mxu0 %v650
    %v723 = vpop.f32.mrb[0].mxu0
    %v724 = vadd.f32 %v644, %v723
    %v725 = vpop.f32.mrb[0].mxu0
    %726 = vdwg.mxu0
    %vm727 = vcmask 523264
    %v728 = vsel %vm727, %v719, -inf
    %729 = vmax.xlane.f32.xlu0 %v728
    %v730 = vpop.xlane.xlu0 %729
    %v731 = vsel %vm727, %v724, -inf
    %732 = vmax.xlane.f32.xlu0 %v731
    %v733 = vpop.xlane.xlu0 %732
    %v734 = vsub.f32 %v719, %v730
    %v735 = vsub.f32 %v724, %v733
    %v736 = vmul.f32 %v734, 1.442695
    %v737 = vpow.pop %v736
    %v738 = vmul.f32 %v735, 1.442695
    %v739 = vpow.pop %v738
    %v740 = vld [vmem:[#allocation2 + $0xc0] sm:$0xff]
    %v741 = vld [vmem:[#allocation2 + $0xc8] sm:$0xff]
    %v742 = vld [vmem:[#allocation2 + $0xd0] sm:$0xff]
    %v743 = vld [vmem:[#allocation2 + $0xd8] sm:$0xff]
    %v744 = vld [vmem:[#allocation2 + $0xe0] sm:$0xff]
    %v745 = vld [vmem:[#allocation2 + $0xe8] sm:$0xff]
    %v746 = vld [vmem:[#allocation2 + $0xf0] sm:$0xff]
    %v747 = vld [vmem:[#allocation2 + $0xf8] sm:$0xff]
    %v748 = vld [vmem:[#allocation2 + $0x100] sm:$0xff]
    %v749 = vld [vmem:[#allocation2 + $0x108] sm:$0xff]
    %v751 = vsel %vm727, %v737, 0
    %v754 = vsel %vm727, %v739, 0
    %756 = vmatprep.subr.mxu0 0.0
    %757 = vmatpush1.msra.mxu0 %v740
    %758 = vmatprep.subr.mxu0 0.0
    %759 = vmatpush1.msra.mxu0 %v741
    %760 = vmatprep.subr.mxu0 0.0
    %761 = vmatpush1.msra.mxu0 %v742
    %762 = vmatprep.subr.mxu0 0.0
    %763 = vmatpush1.msra.mxu0 %v743
    %764 = vmatprep.subr.mxu0 0.0
    %765 = vmatpush1.msra.mxu0 %v744
    %766 = vmatprep.subr.mxu0 0.0
    %767 = vmatpush1.msra.mxu0 %v745
    %768 = vmatprep.subr.mxu0 0.0
    %769 = vmatpush1.msra.mxu0 %v746
    %770 = vmatprep.subr.mxu0 0.0
    %771 = vmatpush1.msra.mxu0 %v747
    %772 = vmatprep.subr.mxu0 0.0
    %773 = vmatpush1.msra.mxu0 0.0
    %774 = vmatprep.subr.mxu0 0.0
    %775 = vmatpush1.msra.mxu0 0.0
    %776 = vmatprep.subr.mxu0 0.0
    %777 = vmatpush1.msra.mxu0 0.0
    %778 = vmatprep.subr.mxu0 0.0
    %779 = vmatpush1.msra.mxu0 0.0
    %780 = vmatprep.subr.mxu0 0.0
    %781 = vmatpush1.msra.mxu0 0.0
    %782 = vmatprep.subr.mxu0 0.0
    %783 = vmatpush1.msra.mxu0 0.0
    %784 = vmatprep.subr.mxu0 0.0
    %785 = vmatpush1.msra.mxu0 0.0
    %786 = vmatprep.subr.mxu0 0.0
    %787 = vmatpush1.msra.mxu0 0.0
    %788 = vmatprep.subr.mxu0 0.0
    %789 = vmatpush1.msra.mxu0 0.0
    %790 = vmatprep.subr.mxu0 0.0
    %791 = vmatpush1.msra.mxu0 0.0
    %792 = vmatprep.subr.mxu0 0.0
    %793 = vmatpush1.msra.mxu0 0.0
    %794 = vmatprep.subr.mxu0 0.0
    %795 = vmatpush1.msra.mxu0 0.0
    %796 = vmatprep.subr.mxu0 0.0
    %797 = vmatpush1.msra.mxu0 0.0
    %798 = vmatprep.subr.mxu0 0.0
    %799 = vmatpush1.msra.mxu0 0.0
    %800 = vmatprep.subr.mxu0 0.0
    %801 = vmatpush1.msra.mxu0 0.0
    %802 = vmatprep.subr.mxu0 0.0
    %803 = vmatpush1.msra.mxu0 0.0
    %804 = vmatprep.subr.mxu0 0.0
    %805 = vmatpush1.msra.mxu0 0.0
    %806 = vmatprep.subr.mxu0 0.0
    %807 = vmatpush1.msra.mxu0 0.0
    %808 = vmatprep.subr.mxu0 0.0
    %809 = vmatpush1.msra.mxu0 0.0
    %810 = vmatprep.subr.mxu0 0.0
    %811 = vmatpush1.msra.mxu0 0.0
    %812 = vmatprep.subr.mxu0 0.0
    %813 = vmatpush1.msra.mxu0 0.0
    %814 = vmatprep.subr.mxu0 0.0
    %815 = vmatpush1.msra.mxu0 0.0
    %816 = vmatprep.subr.mxu0 0.0
    %817 = vmatpush1.msra.mxu0 0.0
    %818 = vmatprep.subr.mxu0 0.0
    %819 = vmatpush1.msra.mxu0 0.0
    %820 = vmatprep.mubr.f32.mxu0 0.0
    %821 = vmatmul.mubr.f32.gmra.mrb[0].mxu0 %v751
    %v822 = vpop.f32.mrb[0].mxu0
    %v823 = vadd.f32 %v748, %v822
    %v824 = vpop.f32.mrb[0].mxu0
    %825 = vmatprep.mubr.f32.mxu0 0.0
    %826 = vmatmul.mubr.f32.gmra.mrb[0].mxu0 %v754
    %v827 = vpop.f32.mrb[0].mxu0
    %v828 = vadd.f32 %v749, %v827
    %v829 = vpop.f32.mrb[0].mxu0
    %830 = vdwg.mxu0
    %v831 = vrcp.pop %v823
    %v832 = vrcp.pop %v828
    %v833 = vmul.f32 %v737, %v831
    %v834 = vmul.f32 %v739, %v832
    %v836 = vsel %vm727, %v833, 0
    %v839 = vsel %vm727, %v834, 0
    %841 = vmatprep.subr.mxu0 0.0
    %842 = vmatpush1.msra.mxu0 %v635
    %843 = vmatprep.subr.mxu0 0.0
    %844 = vmatpush1.msra.mxu0 %v636
    %845 = vmatprep.subr.mxu0 0.0
    %846 = vmatpush1.msra.mxu0 %v637
    %847 = vmatprep.subr.mxu0 0.0
    %848 = vmatpush1.msra.mxu0 %v638
    %849 = vmatprep.subr.mxu0 0.0
    %850 = vmatpush1.msra.mxu0 %v639
    %851 = vmatprep.subr.mxu0 0.0
    %852 = vmatpush1.msra.mxu0 %v640
    %853 = vmatprep.subr.mxu0 0.0
    %854 = vmatpush1.msra.mxu0 %v641
    %855 = vmatprep.subr.mxu0 0.0
    %856 = vmatpush1.msra.mxu0 %v642
    %857 = vmatprep.subr.mxu0 0.0
    %858 = vmatpush1.msra.mxu0 0.0
    %859 = vmatprep.subr.mxu0 0.0
    %860 = vmatpush1.msra.mxu0 0.0
    %861 = vmatprep.subr.mxu0 0.0
    %862 = vmatpush1.msra.mxu0 0.0
    %863 = vmatprep.subr.mxu0 0.0
    %864 = vmatpush1.msra.mxu0 0.0
    %865 = vmatprep.subr.mxu0 0.0
    %866 = vmatpush1.msra.mxu0 0.0
    %867 = vmatprep.subr.mxu0 0.0
    %868 = vmatpush1.msra.mxu0 0.0
    %869 = vmatprep.subr.mxu0 0.0
    %870 = vmatpush1.msra.mxu0 0.0
    %871 = vmatprep.subr.mxu0 0.0
    %872 = vmatpush1.msra.mxu0 0.0
    %873 = vmatprep.subr.mxu0 0.0
    %874 = vmatpush1.msra.mxu0 0.0
    %875 = vmatprep.subr.mxu0 0.0
    %876 = vmatpush1.msra.mxu0 0.0
    %877 = vmatprep.subr.mxu0 0.0
    %878 = vmatpush1.msra.mxu0 0.0
    %879 = vmatprep.subr.mxu0 0.0
    %880 = vmatpush1.msra.mxu0 0.0
    %881 = vmatprep.subr.mxu0 0.0
    %882 = vmatpush1.msra.mxu0 0.0
    %883 = vmatprep.subr.mxu0 0.0
    %884 = vmatpush1.msra.mxu0 0.0
    %885 = vmatprep.subr.mxu0 0.0
    %886 = vmatpush1.msra.mxu0 0.0
    %887 = vmatprep.subr.mxu0 0.0
    %888 = vmatpush1.msra.mxu0 0.0
    %889 = vmatprep.subr.mxu0 0.0
    %890 = vmatpush1.msra.mxu0 0.0
    %891 = vmatprep.subr.mxu0 0.0
    %892 = vmatpush1.msra.mxu0 0.0
    %893 = vmatprep.subr.mxu0 0.0
    %894 = vmatpush1.msra.mxu0 0.0
    %895 = vmatprep.subr.mxu0 0.0
    %896 = vmatpush1.msra.mxu0 0.0
    %897 = vmatprep.subr.mxu0 0.0
    %898 = vmatpush1.msra.mxu0 0.0
    %899 = vmatprep.subr.mxu0 0.0
    %900 = vmatpush1.msra.mxu0 0.0
    %901 = vmatprep.subr.mxu0 0.0
    %902 = vmatpush1.msra.mxu0 0.0
    %903 = vmatprep.subr.mxu0 0.0
    %904 = vmatpush1.msra.mxu0 0.0
    %905 = vmatprep.mubr.f32.mxu0 0.0
    %906 = vmatmul.mubr.f32.gmra.mrb[0].mxu0 %v836
    %v907 = vpop.f32.mrb[0].mxu0
    %v908 = vadd.f32 0.0, %v907
    %v909 = vpop.f32.mrb[0].mxu0
    %910 = vmatprep.mubr.f32.mxu0 0.0
    %911 = vmatmul.mubr.f32.gmra.mrb[0].mxu0 %v839
    %v912 = vpop.f32.mrb[0].mxu0
    %v913 = vadd.f32 0.0, %v912
    %v914 = vpop.f32.mrb[0].mxu0
    %915 = vdwg.mxu0
    %v916 = vld [vmem:[#allocation2 + $0x260] sm:$0xff]
    %v917 = vld [vmem:[#allocation2 + $0x1b0] sm:$0xff]
    %v918 = vld [vmem:[#allocation2 + $0x1b8] sm:$0xff]
    %v919 = vld [vmem:[#allocation2 + $0x1c0] sm:$0xff]
    %v920 = vld [vmem:[#allocation2 + $0x1c8] sm:$0xff]
    %v921 = vlaneseq
    %v922 = vshrl.u32 %v921, 7
    %v923 = vsub.s32 0, %v922
    %v924 = vrot.slane %v916, %v923
    %v926 = vsel %vm645, %v908, 0
    %v929 = vsel %vm645, %v913, 0
    %931 = vmatprep.subr.mxu0 0.0
    %932 = vmatpush1.msra.mxu0 %v917
    %933 = vmatprep.subr.mxu0 0.0
    %934 = vmatpush1.msra.mxu0 %v918
    %935 = vmatprep.subr.mxu0 0.0
    %936 = vmatpush1.msra.mxu0 %v919
    %937 = vmatprep.subr.mxu0 0.0
    %938 = vmatpush1.msra.mxu0 %v920
    %939 = vmatprep.subr.mxu0 0.0
    %940 = vmatpush1.msra.mxu0 0.0
    %941 = vmatprep.subr.mxu0 0.0
    %942 = vmatpush1.msra.mxu0 0.0
    %943 = vmatprep.subr.mxu0 0.0
    %944 = vmatpush1.msra.mxu0 0.0
    %945 = vmatprep.subr.mxu0 0.0
    %946 = vmatpush1.msra.mxu0 0.0
    %947 = vmatprep.subr.mxu0 0.0
    %948 = vmatpush1.msra.mxu0 0.0
    %949 = vmatprep.subr.mxu0 0.0
    %950 = vmatpush1.msra.mxu0 0.0
    %951 = vmatprep.subr.mxu0 0.0
    %952 = vmatpush1.msra.mxu0 0.0
    %953 = vmatprep.subr.mxu0 0.0
    %954 = vmatpush1.msra.mxu0 0.0
    %955 = vmatprep.subr.mxu0 0.0
    %956 = vmatpush1.msra.mxu0 0.0
    %957 = vmatprep.subr.mxu0 0.0
    %958 = vmatpush1.msra.mxu0 0.0
    %959 = vmatprep.subr.mxu0 0.0
    %960 = vmatpush1.msra.mxu0 0.0
    %961 = vmatprep.subr.mxu0 0.0
    %962 = vmatpush1.msra.mxu0 0.0
    %963 = vmatprep.subr.mxu0 0.0
    %964 = vmatpush1.msra.mxu0 0.0
    %965 = vmatprep.subr.mxu0 0.0
    %966 = vmatpush1.msra.mxu0 0.0
    %967 = vmatprep.subr.mxu0 0.0
    %968 = vmatpush1.msra.mxu0 0.0
    %969 = vmatprep.subr.mxu0 0.0
    %970 = vmatpush1.msra.mxu0 0.0
    %971 = vmatprep.subr.mxu0 0.0
    %972 = vmatpush1.msra.mxu0 0.0
    %973 = vmatprep.subr.mxu0 0.0
    %974 = vmatpush1.msra.mxu0 0.0
    %975 = vmatprep.subr.mxu0 0.0
    %976 = vmatpush1.msra.mxu0 0.0
    %977 = vmatprep.subr.mxu0 0.0
    %978 = vmatpush1.msra.mxu0 0.0
    %979 = vmatprep.subr.mxu0 0.0
    %980 = vmatpush1.msra.mxu0 0.0
    %981 = vmatprep.subr.mxu0 0.0
    %982 = vmatpush1.msra.mxu0 0.0
    %983 = vmatprep.subr.mxu0 0.0
    %984 = vmatpush1.msra.mxu0 0.0
    %985 = vmatprep.subr.mxu0 0.0
    %986 = vmatpush1.msra.mxu0 0.0
    %987 = vmatprep.subr.mxu0 0.0
    %988 = vmatpush1.msra.mxu0 0.0
    %989 = vmatprep.subr.mxu0 0.0
    %990 = vmatpush1.msra.mxu0 0.0
    %991 = vmatprep.subr.mxu0 0.0
    %992 = vmatpush1.msra.mxu0 0.0
    %993 = vmatprep.subr.mxu0 0.0
    %994 = vmatpush1.msra.mxu0 0.0
    %995 = vmatprep.mubr.f32.mxu0 0.0
    %996 = vmatmul.mubr.f32.gmra.mrb[0].mxu0 %v926
    %v997 = vpop.f32.mrb[0].mxu0
    %v998 = vadd.f32 %v924, %v997
    %v999 = vpop.f32.mrb[0].mxu0
    %1000 = vmatprep.mubr.f32.mxu0 0.0
    %1001 = vmatmul.mubr.f32.gmra.mrb[0].mxu0 %v929
    %v1002 = vpop.f32.mrb[0].mxu0
    %v1003 = vadd.f32 %v924, %v1002
    %v1004 = vpop.f32.mrb[0].mxu0
    %1005 = vdwg.mxu0
    %v1006 = vadd.f32 %v108, %v998
    %v1007 = vadd.f32 %v113, %v1003
    %v1008 = vsel %vm645, %v1006, 0.0
    %1009 = vadd.xlane.f32.xlu0 %v1008
    %v1010 = vpop.xlane.xlu0 %1009
    %v1011 = vsel %vm645, %v1007, 0.0
    %1012 = vadd.xlane.f32.xlu0 %v1011
    %v1013 = vpop.xlane.xlu0 %1012
    %v1014 = vrcp.pop 32.0
    %v1015 = vmul.f32 %v1010, %v1014
    %v1016 = vmul.f32 %v1013, %v1014
    %v1017 = vsub.f32 %v1006, %v1015
    %v1018 = vsub.f32 %v1007, %v1016
    %v1019 = vmul.f32 %v1017, %v1017
    %v1020 = vmul.f32 %v1018, %v1018
    %v1021 = vsel %vm645, %v1019, 0.0
    %1022 = vadd.xlane.f32.xlu0 %v1021
    %v1023 = vpop.xlane.xlu0 %1022
    %v1024 = vsel %vm645, %v1020, 0.0
    %1025 = vadd.xlane.f32.xlu0 %v1024
    %v1026 = vpop.xlane.xlu0 %1025
    %v1027 = vmul.f32 %v1023, %v1014
    %v1028 = vmul.f32 %v1026, %v1014
    %v1029 = vadd.f32 %v1027, 1e-05
    %v1030 = vadd.f32 %v1028, 1e-05
    %v1031 = vrsqrt.pop %v1029
    %v1032 = vrsqrt.pop %v1030
    %v1033 = vmul.f32 %v1017, %v1031
    %v1034 = vmul.f32 %v1018, %v1032
    %v1035 = vlaneseq
    %v1036 = vshrl.u32 %v1035, 7
    %v1037 = vsub.s32 2, %v1036
    %v1038 = vrot.slane %v916, %v1037
    %v1039 = vmul.f32 %v1033, %v1038
    %v1040 = vmul.f32 %v1034, %v1038
    %v1041 = vlaneseq
    %v1042 = vshrl.u32 %v1041, 7
    %v1043 = vsub.s32 3, %v1042
    %v1044 = vrot.slane %v916, %v1043
    %v1045 = vadd.f32 %v1039, %v1044
    %v1046 = vadd.f32 %v1040, %v1044
    %v1047 = vld [vmem:[#allocation2 + $0x1d0] sm:$0xff]
    %v1048 = vld [vmem:[#allocation2 + $0x1d8] sm:$0xff]
    %v1049 = vld [vmem:[#allocation2 + $0x1e0] sm:$0xff]
    %v1050 = vld [vmem:[#allocation2 + $0x1e8] sm:$0xff]
    %v1051 = vld [vmem:[#allocation2 + $0x250] sm:$0x1]
    %v1052 = vlaneseq
    %v1053 = vshrl.u32 %v1052, 7
    %v1054 = vsub.s32 0, %v1053
    %v1055 = vrot.slane %v1051, %v1054
    %v1057 = vsel %vm645, %v1045, 0
    %v1060 = vsel %vm645, %v1046, 0
    %1062 = vmatprep.subr.mxu0 0.0
    %1063 = vmatpush1.msra.mxu0 %v1047
    %1064 = vmatprep.subr.mxu0 0.0
    %1065 = vmatpush1.msra.mxu0 %v1048
    %1066 = vmatprep.subr.mxu0 0.0
    %1067 = vmatpush1.msra.mxu0 %v1049
    %1068 = vmatprep.subr.mxu0 0.0
    %1069 = vmatpush1.msra.mxu0 %v1050
    %1070 = vmatprep.subr.mxu0 0.0
    %1071 = vmatpush1.msra.mxu0 0.0
    %1072 = vmatprep.subr.mxu0 0.0
    %1073 = vmatpush1.msra.mxu0 0.0
    %1074 = vmatprep.subr.mxu0 0.0
    %1075 = vmatpush1.msra.mxu0 0.0
    %1076 = vmatprep.subr.mxu0 0.0
    %1077 = vmatpush1.msra.mxu0 0.0
    %1078 = vmatprep.subr.mxu0 0.0
    %1079 = vmatpush1.msra.mxu0 0.0
    %1080 = vmatprep.subr.mxu0 0.0
    %1081 = vmatpush1.msra.mxu0 0.0
    %1082 = vmatprep.subr.mxu0 0.0
    %1083 = vmatpush1.msra.mxu0 0.0
    %1084 = vmatprep.subr.mxu0 0.0
    %1085 = vmatpush1.msra.mxu0 0.0
    %1086 = vmatprep.subr.mxu0 0.0
    %1087 = vmatpush1.msra.mxu0 0.0
    %1088 = vmatprep.subr.mxu0 0.0
    %1089 = vmatpush1.msra.mxu0 0.0
    %1090 = vmatprep.subr.mxu0 0.0
    %1091 = vmatpush1.msra.mxu0 0.0
    %1092 = vmatprep.subr.mxu0 0.0
    %1093 = vmatpush1.msra.mxu0 0.0
    %1094 = vmatprep.subr.mxu0 0.0
    %1095 = vmatpush1.msra.mxu0 0.0
    %1096 = vmatprep.subr.mxu0 0.0
    %1097 = vmatpush1.msra.mxu0 0.0
    %1098 = vmatprep.subr.mxu0 0.0
    %1099 = vmatpush1.msra.mxu0 0.0
    %1100 = vmatprep.subr.mxu0 0.0
    %1101 = vmatpush1.msra.mxu0 0.0
    %1102 = vmatprep.subr.mxu0 0.0
    %1103 = vmatpush1.msra.mxu0 0.0
    %1104 = vmatprep.subr.mxu0 0.0
    %1105 = vmatpush1.msra.mxu0 0.0
    %1106 = vmatprep.subr.mxu0 0.0
    %1107 = vmatpush1.msra.mxu0 0.0
    %1108 = vmatprep.subr.mxu0 0.0
    %1109 = vmatpush1.msra.mxu0 0.0
    %1110 = vmatprep.subr.mxu0 0.0
    %1111 = vmatpush1.msra.mxu0 0.0
    %1112 = vmatprep.subr.mxu0 0.0
    %1113 = vmatpush1.msra.mxu0 0.0
    %1114 = vmatprep.subr.mxu0 0.0
    %1115 = vmatpush1.msra.mxu0 0.0
    %1116 = vmatprep.subr.mxu0 0.0
    %1117 = vmatpush1.msra.mxu0 0.0
    %1118 = vmatprep.subr.mxu0 0.0
    %1119 = vmatpush1.msra.mxu0 0.0
    %1120 = vmatprep.subr.mxu0 0.0
    %1121 = vmatpush1.msra.mxu0 0.0
    %1122 = vmatprep.subr.mxu0 0.0
    %1123 = vmatpush1.msra.mxu0 0.0
    %1124 = vmatprep.subr.mxu0 0.0
    %1125 = vmatpush1.msra.mxu0 0.0
    %1126 = vmatprep.mubr.f32.mxu0 0.0
    %1127 = vmatmul.mubr.f32.gmra.mrb[0].mxu0 %v1057
    %v1128 = vpop.f32.mrb[0].mxu0
    %v1129 = vadd.f32 %v1055, %v1128
    %v1130 = vpop.f32.mrb[0].mxu0
    %1131 = vmatprep.mubr.f32.mxu0 0.0
    %1132 = vmatmul.mubr.f32.gmra.mrb[0].mxu0 %v1060
    %v1133 = vpop.f32.mrb[0].mxu0
    %v1134 = vadd.f32 %v1055, %v1133
    %v1135 = vpop.f32.mrb[0].mxu0
    %1136 = vdwg.mxu0
    %v1137 = vmax.f32 %v1129, 0.0
    %v1138 = vmax.f32 %v1134, 0.0
    %v1139 = vld [vmem:[#allocation2 + $0x1f0] sm:$0xff]
    %v1140 = vld [vmem:[#allocation2 + $0x1f8] sm:$0xff]
    %v1141 = vld [vmem:[#allocation2 + $0x200] sm:$0xff]
    %v1142 = vld [vmem:[#allocation2 + $0x208] sm:$0xff]
    %v1143 = vld [vmem:[#allocation2 + $0x210] sm:$0xff]
    %v1144 = vld [vmem:[#allocation2 + $0x218] sm:$0xff]
    %v1145 = vld [vmem:[#allocation2 + $0x220] sm:$0xff]
    %v1146 = vld [vmem:[#allocation2 + $0x228] sm:$0xff]
    %v1147 = vlaneseq
    %v1148 = vshrl.u32 %v1147, 7
    %v1149 = vsub.s32 1, %v1148
    %v1150 = vrot.slane %v916, %v1149
    %v1152 = vsel %vm727, %v1137, 0
    %v1155 = vsel %vm727, %v1138, 0
    %1157 = vmatprep.subr.mxu0 0.0
    %1158 = vmatpush1.msra.mxu0 %v1139
    %1159 = vmatprep.subr.mxu0 0.0
    %1160 = vmatpush1.msra.mxu0 %v1140
    %1161 = vmatprep.subr.mxu0 0.0
    %1162 = vmatpush1.msra.mxu0 %v1141
    %1163 = vmatprep.subr.mxu0 0.0
    %1164 = vmatpush1.msra.mxu0 %v1142
    %1165 = vmatprep.subr.mxu0 0.0
    %1166 = vmatpush1.msra.mxu0 %v1143
    %1167 = vmatprep.subr.mxu0 0.0
    %1168 = vmatpush1.msra.mxu0 %v1144
    %1169 = vmatprep.subr.mxu0 0.0
    %1170 = vmatpush1.msra.mxu0 %v1145
    %1171 = vmatprep.subr.mxu0 0.0
    %1172 = vmatpush1.msra.mxu0 %v1146
    %1173 = vmatprep.subr.mxu0 0.0
    %1174 = vmatpush1.msra.mxu0 0.0
    %1175 = vmatprep.subr.mxu0 0.0
    %1176 = vmatpush1.msra.mxu0 0.0
    %1177 = vmatprep.subr.mxu0 0.0
    %1178 = vmatpush1.msra.mxu0 0.0
    %1179 = vmatprep.subr.mxu0 0.0
    %1180 = vmatpush1.msra.mxu0 0.0
    %1181 = vmatprep.subr.mxu0 0.0
    %1182 = vmatpush1.msra.mxu0 0.0
    %1183 = vmatprep.subr.mxu0 0.0
    %1184 = vmatpush1.msra.mxu0 0.0
    %1185 = vmatprep.subr.mxu0 0.0
    %1186 = vmatpush1.msra.mxu0 0.0
    %1187 = vmatprep.subr.mxu0 0.0
    %1188 = vmatpush1.msra.mxu0 0.0
    %1189 = vmatprep.subr.mxu0 0.0
    %1190 = vmatpush1.msra.mxu0 0.0
    %1191 = vmatprep.subr.mxu0 0.0
    %1192 = vmatpush1.msra.mxu0 0.0
    %1193 = vmatprep.subr.mxu0 0.0
    %1194 = vmatpush1.msra.mxu0 0.0
    %1195 = vmatprep.subr.mxu0 0.0
    %1196 = vmatpush1.msra.mxu0 0.0
    %1197 = vmatprep.subr.mxu0 0.0
    %1198 = vmatpush1.msra.mxu0 0.0
    %1199 = vmatprep.subr.mxu0 0.0
    %1200 = vmatpush1.msra.mxu0 0.0
    %1201 = vmatprep.subr.mxu0 0.0
    %1202 = vmatpush1.msra.mxu0 0.0
    %1203 = vmatprep.subr.mxu0 0.0
    %1204 = vmatpush1.msra.mxu0 0.0
    %1205 = vmatprep.subr.mxu0 0.0
    %1206 = vmatpush1.msra.mxu0 0.0
    %1207 = vmatprep.subr.mxu0 0.0
    %1208 = vmatpush1.msra.mxu0 0.0
    %1209 = vmatprep.subr.mxu0 0.0
    %1210 = vmatpush1.msra.mxu0 0.0
    %1211 = vmatprep.subr.mxu0 0.0
    %1212 = vmatpush1.msra.mxu0 0.0
    %1213 = vmatprep.subr.mxu0 0.0
    %1214 = vmatpush1.msra.mxu0 0.0
    %1215 = vmatprep.subr.mxu0 0.0
    %1216 = vmatpush1.msra.mxu0 0.0
    %1217 = vmatprep.subr.mxu0 0.0
    %1218 = vmatpush1.msra.mxu0 0.0
    %1219 = vmatprep.subr.mxu0 0.0
    %1220 = vmatpush1.msra.mxu0 0.0
    %1221 = vmatprep.mubr.f32.mxu0 0.0
    %1222 = vmatmul.mubr.f32.gmra.mrb[0].mxu0 %v1152
    %v1223 = vpop.f32.mrb[0].mxu0
    %v1224 = vadd.f32 %v1150, %v1223
    %v1225 = vpop.f32.mrb[0].mxu0
    %1226 = vmatprep.mubr.f32.mxu0 0.0
    %1227 = vmatmul.mubr.f32.gmra.mrb[0].mxu0 %v1155
    %v1228 = vpop.f32.mrb[0].mxu0
    %v1229 = vadd.f32 %v1150, %v1228
    %v1230 = vpop.f32.mrb[0].mxu0
    %1231 = vdwg.mxu0
    %v1232 = vadd.f32 %v1045, %v1224
    %v1233 = vadd.f32 %v1046, %v1229
    %v1234 = vsel %vm645, %v1232, 0.0
    %1235 = vadd.xlane.f32.xlu0 %v1234
    %v1236 = vpop.xlane.xlu0 %1235
    %v1237 = vsel %vm645, %v1233, 0.0
    %1238 = vadd.xlane.f32.xlu0 %v1237
    %v1239 = vpop.xlane.xlu0 %1238
    %v1240 = vmul.f32 %v1236, %v1014
    %v1241 = vmul.f32 %v1239, %v1014
    %v1242 = vsub.f32 %v1232, %v1240
    %v1243 = vsub.f32 %v1233, %v1241
    %v1244 = vmul.f32 %v1242, %v1242
    %v1245 = vmul.f32 %v1243, %v1243
    %v1246 = vsel %vm645, %v1244, 0.0
    %1247 = vadd.xlane.f32.xlu0 %v1246
    %v1248 = vpop.xlane.xlu0 %1247
    %v1249 = vsel %vm645, %v1245, 0.0
    %1250 = vadd.xlane.f32.xlu0 %v1249
    %v1251 = vpop.xlane.xlu0 %1250
    %v1252 = vmul.f32 %v1248, %v1014
    %v1253 = vmul.f32 %v1251, %v1014
    %v1254 = vadd.f32 %v1252, 1e-05
    %v1255 = vadd.f32 %v1253, 1e-05
    %v1256 = vrsqrt.pop %v1254
    %v1257 = vrsqrt.pop %v1255
    %v1258 = vmul.f32 %v1242, %v1256
    %v1259 = vmul.f32 %v1243, %v1257
    %v1260 = vlaneseq
    %v1261 = vshrl.u32 %v1260, 7
    %v1262 = vsub.s32 4, %v1261
    %v1263 = vrot.slane %v916, %v1262
    %v1264 = vmul.f32 %v1258, %v1263
    %v1265 = vmul.f32 %v1259, %v1263
    %v1266 = vlaneseq
    %v1267 = vshrl.u32 %v1266, 7
    %v1268 = vsub.s32 5, %v1267
    %v1269 = vrot.slane %v916, %v1268
    %v1270 = vadd.f32 %v1264, %v1269
    %v1271 = vadd.f32 %v1265, %v1269
    %v1272 = vsel %vm645, %v1270, 0.0
    %1273 = vadd.xlane.f32.xlu0 %v1272
    %v1274 = vpop.xlane.xlu0 %1273
    %v1275 = vsel %vm645, %v1271, 0.0
    %1276 = vadd.xlane.f32.xlu0 %v1275
    %v1277 = vpop.xlane.xlu0 %1276
    %v1278 = vmul.f32 %v1274, %v1014
    %v1279 = vmul.f32 %v1277, %v1014
    %v1280 = vsub.f32 %v1270, %v1278
    %v1281 = vsub.f32 %v1271, %v1279
    %v1282 = vmul.f32 %v1280, %v1280
    %v1283 = vmul.f32 %v1281, %v1281
    %v1284 = vsel %vm645, %v1282, 0.0
    %1285 = vadd.xlane.f32.xlu0 %v1284
    %v1286 = vpop.xlane.xlu0 %1285
    %v1287 = vsel %vm645, %v1283, 0.0
    %1288 = vadd.xlane.f32.xlu0 %v1287
    %v1289 = vpop.xlane.xlu0 %1288
    %v1290 = vmul.f32 %v1286, %v1014
    %v1291 = vmul.f32 %v1289, %v1014
    %v1292 = vadd.f32 %v1290, 1e-05
    %v1293 = vadd.f32 %v1291, 1e-05
    %v1294 = vrsqrt.pop %v1292
    %v1295 = vrsqrt.pop %v1293
    %v1296 = vmul.f32 %v1280, %v1294
    %v1297 = vmul.f32 %v1281, %v1295
    %v1298 = vlaneseq
    %v1299 = vshrl.u32 %v1298, 7
    %v1300 = vsub.s32 6, %v1299
    %v1301 = vrot.slane %v916, %v1300
    %v1302 = vmul.f32 %v1296, %v1301
    %v1303 = vmul.f32 %v1297, %v1301
    %v1304 = vlaneseq
    %v1305 = vshrl.u32 %v1304, 7
    %v1306 = vsub.s32 7, %v1305
    %v1307 = vrot.slane %v916, %v1306
    %v1308 = vadd.f32 %v1302, %v1307
    %v1309 = vadd.f32 %v1303, %v1307
    %v1310 = vld [vmem:[#allocation2 + $0x230] sm:$0xff]
    %v1311 = vld [vmem:[#allocation2 + $0x238] sm:$0xff]
    %v1312 = vld [vmem:[#allocation2 + $0x240] sm:$0xff]
    %v1313 = vld [vmem:[#allocation2 + $0x248] sm:$0xff]
    %v1314 = vld [vmem:[#allocation2 + $0x258] sm:$0x1]
    %v1315 = vlaneseq
    %v1316 = vshrl.u32 %v1315, 7
    %v1317 = vsub.s32 0, %v1316
    %v1318 = vrot.slane %v1314, %v1317
    %v1320 = vsel %vm645, %v1308, 0
    %v1323 = vsel %vm645, %v1309, 0
    %1325 = vmatprep.subr.mxu0 0.0
    %1326 = vmatpush1.msra.mxu0 %v1310
    %1327 = vmatprep.subr.mxu0 0.0
    %1328 = vmatpush1.msra.mxu0 %v1311
    %1329 = vmatprep.subr.mxu0 0.0
    %1330 = vmatpush1.msra.mxu0 %v1312
    %1331 = vmatprep.subr.mxu0 0.0
    %1332 = vmatpush1.msra.mxu0 %v1313
    %1333 = vmatprep.subr.mxu0 0.0
    %1334 = vmatpush1.msra.mxu0 0.0
    %1335 = vmatprep.subr.mxu0 0.0
    %1336 = vmatpush1.msra.mxu0 0.0
    %1337 = vmatprep.subr.mxu0 0.0
    %1338 = vmatpush1.msra.mxu0 0.0
    %1339 = vmatprep.subr.mxu0 0.0
    %1340 = vmatpush1.msra.mxu0 0.0
    %1341 = vmatprep.subr.mxu0 0.0
    %1342 = vmatpush1.msra.mxu0 0.0
    %1343 = vmatprep.subr.mxu0 0.0
    %1344 = vmatpush1.msra.mxu0 0.0
    %1345 = vmatprep.subr.mxu0 0.0
    %1346 = vmatpush1.msra.mxu0 0.0
    %1347 = vmatprep.subr.mxu0 0.0
    %1348 = vmatpush1.msra.mxu0 0.0
    %1349 = vmatprep.subr.mxu0 0.0
    %1350 = vmatpush1.msra.mxu0 0.0
    %1351 = vmatprep.subr.mxu0 0.0
    %1352 = vmatpush1.msra.mxu0 0.0
    %1353 = vmatprep.subr.mxu0 0.0
    %1354 = vmatpush1.msra.mxu0 0.0
    %1355 = vmatprep.subr.mxu0 0.0
    %1356 = vmatpush1.msra.mxu0 0.0
    %1357 = vmatprep.subr.mxu0 0.0
    %1358 = vmatpush1.msra.mxu0 0.0
    %1359 = vmatprep.subr.mxu0 0.0
    %1360 = vmatpush1.msra.mxu0 0.0
    %1361 = vmatprep.subr.mxu0 0.0
    %1362 = vmatpush1.msra.mxu0 0.0
    %1363 = vmatprep.subr.mxu0 0.0
    %1364 = vmatpush1.msra.mxu0 0.0
    %1365 = vmatprep.subr.mxu0 0.0
    %1366 = vmatpush1.msra.mxu0 0.0
    %1367 = vmatprep.subr.mxu0 0.0
    %1368 = vmatpush1.msra.mxu0 0.0
    %1369 = vmatprep.subr.mxu0 0.0
    %1370 = vmatpush1.msra.mxu0 0.0
    %1371 = vmatprep.subr.mxu0 0.0
    %1372 = vmatpush1.msra.mxu0 0.0
    %1373 = vmatprep.subr.mxu0 0.0
    %1374 = vmatpush1.msra.mxu0 0.0
    %1375 = vmatprep.subr.mxu0 0.0
    %1376 = vmatpush1.msra.mxu0 0.0
    %1377 = vmatprep.subr.mxu0 0.0
    %1378 = vmatpush1.msra.mxu0 0.0
    %1379 = vmatprep.subr.mxu0 0.0
    %1380 = vmatpush1.msra.mxu0 0.0
    %1381 = vmatprep.subr.mxu0 0.0
    %1382 = vmatpush1.msra.mxu0 0.0
    %1383 = vmatprep.subr.mxu0 0.0
    %1384 = vmatpush1.msra.mxu0 0.0
    %1385 = vmatprep.subr.mxu0 0.0
    %1386 = vmatpush1.msra.mxu0 0.0
    %1387 = vmatprep.subr.mxu0 0.0
    %1388 = vmatpush1.msra.mxu0 0.0
    %1389 = vmatprep.mubr.f32.mxu0 0.0
    %1390 = vmatmul.mubr.f32.gmra.mrb[0].mxu0 %v1320
    %v1391 = vpop.f32.mrb[0].mxu0
    %v1392 = vadd.f32 %v1318, %v1391
    %v1393 = vpop.f32.mrb[0].mxu0
    %1394 = vmatprep.mubr.f32.mxu0 0.0
    %1395 = vmatmul.mubr.f32.gmra.mrb[0].mxu0 %v1323
    %v1396 = vpop.f32.mrb[0].mxu0
    %v1397 = vadd.f32 %v1318, %v1396
    %v1398 = vpop.f32.mrb[0].mxu0
    %1399 = vdwg.mxu0
    %1400 = vst.msk [vmem:[#allocation5] sm:$0xff] %vm34, %v1392
    %1401 = vst.msk [vmem:[#allocation5 + $0x8] sm:$0xff] %vm34, %v1397
    // Predicated region
    $region14: #{transformer_dual_forward.1} parent=1 // pred_check
      _
    $region15: #{transformer_dual_forward.1} parent=1 // pred_check_branch
      %1403 = sbr.rel (0) target = $region17
    $region16: #{transformer_dual_forward.1} parent=1 // pred_region
      %s1405 = ssub.s32 256, 256
      %1406 = vsyncadd [#allocation4], %s1405
      %s1407 = sshll.u32 [#allocation5], 4
      %s1408 = int_to_ptr.vmem [resolvable:$true] %s1407
      %1413 = dma.vmem_to_hbm [thread:$0]  %s1408, 256, %s2, [#allocation4], 128, 128, 8
    $region17: #{transformer_dual_forward.1} parent=1 // pred_fallthru
      _
    // Predicated region
    $region18: #{transformer_dual_forward.1} parent=1 // pred_check
      _
    $region19: #{transformer_dual_forward.1} parent=1 // pred_check_branch
      %1415 = sbr.rel (0) target = $region21
    $region20: #{transformer_dual_forward.1} parent=1 // pred_region
      %1416 = dma.done [#allocation4], 256
    $region21: #{transformer_dual_forward.1} parent=1 // pred_fallthru
      _
    %1417 = vsyncpa [#allocation3], 1
    %1418 = vsyncpa [#allocation4], 1

</llo_original>
